<compile_context>
chip_gen: v7x
topology: tpu7x:2x2x1
jax: 0.10.0
libtpu: 0.0.40
codegen_flags: <defaults>
</compile_context>

<pallas_src>
import functools

import jax
import jax.numpy as jnp
from jax.experimental import pallas as pl
from jax.experimental.pallas import tpu as pltpu


def char_rnn_kernel(x_ref, wih_ref, whh_ref, b_ref, wfc_ref, bfc_ref,
                    out_ref, xw_scr, hseq_scr, *, batch, seq):
    """Single-invocation LSTM over time.

    x_ref:    (T*B, I)   time-major, flattened input
    wih_ref:  (I, 4H)    W_ih^T
    whh_ref:  (H, 4H)    W_hh^T
    b_ref:    (1, 4H)    b_ih + b_hh
    wfc_ref:  (H, I)     W_fc^T
    bfc_ref:  (1, I)     b_fc
    out_ref:  (T*B, I)
    xw_scr:   (T*B, 4H)  VMEM scratch, hoisted input projection
    hseq_scr: (T*B, H)   VMEM scratch, per-step hidden states
    """
    H = whh_ref.shape[0]

    # (1) Hoisted input projection for all T*B rows at once (single MXU matmul,
    #     off the serial critical path).  Bias fused here.
    xw_scr[...] = (jnp.dot(x_ref[...], wih_ref[...],
                           preferred_element_type=jnp.float32)
                   + b_ref[...])

    whh = whh_ref[...]  # keep the recurrent weights resident across the loop

    # (2) Serial recurrence: only h @ W_hh^T + elementwise gate math per step.
    def step(t, carry):
        h, c = carry
        row = t * batch  # static under full unroll
        gates = xw_scr[pl.ds(row, batch), :] + jnp.dot(
            h, whh, preferred_element_type=jnp.float32)          # (B, 4H)

        # Full-width activations (two EUP pushes over the whole gates vreg),
        # then slice out the i,f,g,o quarters.
        sig = jax.nn.sigmoid(gates)
        th = jnp.tanh(gates)
        i_g = sig[:, 0 * H:1 * H]
        f_g = sig[:, 1 * H:2 * H]
        g_g = th[:, 2 * H:3 * H]
        o_g = sig[:, 3 * H:4 * H]

        c_new = f_g * c + i_g * g_g
        h_new = o_g * jnp.tanh(c_new)

        hseq_scr[pl.ds(row, batch), :] = h_new
        return (h_new, c_new)

    h0 = jnp.zeros((batch, H), jnp.float32)
    c0 = jnp.zeros((batch, H), jnp.float32)
    jax.lax.fori_loop(0, seq, step, (h0, c0), unroll=True)

    # (3) Hoisted fc: one batched matmul + one bulk store for all time steps.
    out_ref[...] = (jnp.dot(hseq_scr[...], wfc_ref[...],
                            preferred_element_type=jnp.float32)
                    + bfc_ref[...]).astype(out_ref.dtype)


def char_rnn_forward(x, params):
    """x: (B, T, input_size) float32 -> (B, T, input_size) float32."""
    B, T, I = x.shape
    H = params["w_hh_t"].shape[0]

    # Time-major, flattened rows: row t*B + b is (batch b, time t).
    x_tm = jnp.transpose(x, (1, 0, 2)).reshape(T * B, I)

    kernel = functools.partial(char_rnn_kernel, batch=B, seq=T)

    out_flat = pl.pallas_call(
        kernel,
        out_shape=jax.ShapeDtypeStruct((T * B, I), jnp.float32),
        grid_spec=pltpu.PrefetchScalarGridSpec(
            num_scalar_prefetch=0,
            grid=(1,),                                      # single invocation
            in_specs=[
                pl.BlockSpec((T * B, I), lambda i: (0, 0)),      # x (flat, time-major)
                pl.BlockSpec((I, 4 * H), lambda i: (0, 0)),      # W_ih^T
                pl.BlockSpec((H, 4 * H), lambda i: (0, 0)),      # W_hh^T
                pl.BlockSpec((1, 4 * H), lambda i: (0, 0)),      # b_ih + b_hh
                pl.BlockSpec((H, I), lambda i: (0, 0)),          # W_fc^T
                pl.BlockSpec((1, I), lambda i: (0, 0)),          # b_fc
            ],
            out_specs=pl.BlockSpec((T * B, I), lambda i: (0, 0)),
            scratch_shapes=[
                pltpu.VMEM((T * B, 4 * H), jnp.float32),   # hoisted x @ W_ih^T
                pltpu.VMEM((T * B, H), jnp.float32),       # h_t for all steps
            ],
        ),
        compiler_params=pltpu.CompilerParams(
            dimension_semantics=("arbitrary",)),
    )(x_tm, params["w_ih_t"], params["w_hh_t"], params["b"],
      params["w_fc_t"], params["b_fc"])

    return jnp.transpose(out_flat.reshape(T, B, I), (1, 0, 2))  # (B, T, I)


def init_params(key, input_size, hidden_size):
    """Deterministic init matching PyTorch parameter shapes (uniform +-1/sqrt(H))."""
    ks = jax.random.split(key, 6)
    bound = 1.0 / jnp.sqrt(hidden_size)
    w_ih = jax.random.uniform(ks[0], (4 * hidden_size, input_size),
                              minval=-bound, maxval=bound, dtype=jnp.float32)
    w_hh = jax.random.uniform(ks[1], (4 * hidden_size, hidden_size),
                              minval=-bound, maxval=bound, dtype=jnp.float32)
    b_ih = jax.random.uniform(ks[2], (4 * hidden_size,),
                              minval=-bound, maxval=bound, dtype=jnp.float32)
    b_hh = jax.random.uniform(ks[3], (4 * hidden_size,),
                              minval=-bound, maxval=bound, dtype=jnp.float32)
    w_fc = jax.random.uniform(ks[4], (input_size, hidden_size),
                              minval=-bound, maxval=bound, dtype=jnp.float32)
    b_fc = jax.random.uniform(ks[5], (input_size,),
                              minval=-bound, maxval=bound, dtype=jnp.float32)
    return {
        "w_ih_t": w_ih.T,                                 # (I, 4H)
        "w_hh_t": w_hh.T,                                 # (H, 4H)
        "b": (b_ih + b_hh).reshape(1, 4 * hidden_size),   # (1, 4H)
        "w_fc_t": w_fc.T,                                 # (H, I)
        "b_fc": b_fc.reshape(1, input_size),              # (1, I)
    }


def char_rnn_reference(x, params):
    """Pure-JAX reference of the PyTorch forward (lax.scan over time)."""
    B, T, I = x.shape
    H = params["w_hh_t"].shape[0]

    def step(carry, x_t):
        h, c = carry
        gates = x_t @ params["w_ih_t"] + h @ params["w_hh_t"] + params["b"]
        i_g = jax.nn.sigmoid(gates[:, 0 * H:1 * H])
        f_g = jax.nn.sigmoid(gates[:, 1 * H:2 * H])
        g_g = jnp.tanh(gates[:, 2 * H:3 * H])
        o_g = jax.nn.sigmoid(gates[:, 3 * H:4 * H])
        c_new = f_g * c + i_g * g_g
        h_new = o_g * jnp.tanh(c_new)
        return (h_new, c_new), h_new

    init = (jnp.zeros((B, H), jnp.float32), jnp.zeros((B, H), jnp.float32))
    _, hs = jax.lax.scan(step, init, jnp.transpose(x, (1, 0, 2)))   # (T, B, H)
    out = hs @ params["w_fc_t"] + params["b_fc"]                    # (T, B, I)
    return jnp.transpose(out, (1, 0, 2))


if __name__ == "__main__":
    B, T, INPUT_SIZE, HIDDEN_SIZE = 8, 8, 16, 32

    key = jax.random.PRNGKey(0)
    k_x, k_p = jax.random.split(key)
    x = jax.random.normal(k_x, (B, T, INPUT_SIZE), dtype=jnp.float32)
    params = init_params(k_p, INPUT_SIZE, HIDDEN_SIZE)

    out = char_rnn_forward(x, params)
    out = jax.block_until_ready(out)

    ref = jax.block_until_ready(char_rnn_reference(x, params))
    assert out.shape == (B, T, INPUT_SIZE)
    assert jnp.allclose(out, ref, atol=1e-4, rtol=1e-4), "mismatch vs reference"

    print("KERNEL_OK")
</pallas_src>

<mosaic_0001>
module attributes {stable_mosaic.version = 11 : i64} {
  func.func @char_rnn_kernel(%arg0: i32, %arg1: memref<64x16xf32, #tpu.memory_space<vmem>>, %arg2: memref<16x128xf32, #tpu.memory_space<vmem>>, %arg3: memref<32x128xf32, #tpu.memory_space<vmem>>, %arg4: memref<1x128xf32, #tpu.memory_space<vmem>>, %arg5: memref<32x16xf32, #tpu.memory_space<vmem>>, %arg6: memref<1x16xf32, #tpu.memory_space<vmem>>, %arg7: memref<64x16xf32, #tpu.memory_space<vmem>>, %arg8: memref<64x128xf32, #tpu.memory_space<vmem>>, %arg9: memref<64x32xf32, #tpu.memory_space<vmem>>) attributes {dimension_semantics = [#tpu.dimension_semantics<arbitrary>], iteration_bounds = array<i64: 1>, scalar_prefetch = 0 : i64, scratch_operands = 2 : i64, tpu.core_type = #tpu.core_type<tc>, window_params = [{pipeline_mode = #tpu.pipeline_mode<synchronous>, transform_indices = @transform_0, window_bounds = array<i64: 64, 16>}, {pipeline_mode = #tpu.pipeline_mode<synchronous>, transform_indices = @transform_1, window_bounds = array<i64: 16, 128>}, {pipeline_mode = #tpu.pipeline_mode<synchronous>, transform_indices = @transform_2, window_bounds = array<i64: 32, 128>}, {pipeline_mode = #tpu.pipeline_mode<synchronous>, transform_indices = @transform_3, window_bounds = array<i64: 1, 128>}, {pipeline_mode = #tpu.pipeline_mode<synchronous>, transform_indices = @transform_4, window_bounds = array<i64: 32, 16>}, {pipeline_mode = #tpu.pipeline_mode<synchronous>, transform_indices = @transform_5, window_bounds = array<i64: 1, 16>}, {pipeline_mode = #tpu.pipeline_mode<synchronous>, transform_indices = @transform_6, window_bounds = array<i64: 64, 16>}]} {
    %c0 = arith.constant 0 : index
    %c0_0 = arith.constant 0 : index
    %0 = vector.load %arg1[%c0, %c0_0] : memref<64x16xf32, #tpu.memory_space<vmem>>, vector<64x16xf32>
    %c0_1 = arith.constant 0 : index
    %c0_2 = arith.constant 0 : index
    %1 = vector.load %arg2[%c0_1, %c0_2] : memref<16x128xf32, #tpu.memory_space<vmem>>, vector<16x128xf32>
    %cst = arith.constant dense<0.000000e+00> : vector<64x128xf32>
    %2 = tpu.matmul %0, %1, %cst {dimension_numbers = #tpu.dot_dimension_numbers<[1], [0], [0], [1], [0, 0, 1, 1], [], []>} : vector<64x16xf32>, vector<16x128xf32>, vector<64x128xf32> -> vector<64x128xf32>
    %c0_3 = arith.constant 0 : index
    %c0_4 = arith.constant 0 : index
    %3 = vector.load %arg4[%c0_3, %c0_4] : memref<1x128xf32, #tpu.memory_space<vmem>>, vector<1x128xf32>
    %4 = vector.broadcast %3 : vector<1x128xf32> to vector<64x128xf32>
    %5 = arith.addf %2, %4 : vector<64x128xf32>
    %c0_5 = arith.constant 0 : index
    %c0_6 = arith.constant 0 : index
    %6 = vector.load %arg8[%c0_5, %c0_6] : memref<64x128xf32, #tpu.memory_space<vmem>>, vector<64x128xf32>
    tpu.vector_store %arg8[%c0_5, %c0_6], %5 {strides = array<i32>} : memref<64x128xf32, #tpu.memory_space<vmem>>, vector<64x128xf32>,
    %c0_7 = arith.constant 0 : index
    %c0_8 = arith.constant 0 : index
    %7 = vector.load %arg3[%c0_7, %c0_8] : memref<32x128xf32, #tpu.memory_space<vmem>>, vector<32x128xf32>
    %cst_9 = arith.constant 0.000000e+00 : f32
    %8 = vector.broadcast %cst_9 : f32 to vector<8x32xf32>
    %cst_10 = arith.constant 0.000000e+00 : f32
    %9 = vector.broadcast %cst_10 : f32 to vector<8x32xf32>
    %c0_i32 = arith.constant 0 : i32
    %c8_i32 = arith.constant 8 : i32
    %10 = arith.muli %c0_i32, %c8_i32 : i32
    %11 = arith.index_cast %10 : i32 to index
    %c0_11 = arith.constant 0 : index
    %12 = vector.load %arg8[%11, %c0_11] : memref<64x128xf32, #tpu.memory_space<vmem>>, vector<8x128xf32>
    %cst_12 = arith.constant dense<0.000000e+00> : vector<8x128xf32>
    %13 = tpu.matmul %8, %7, %cst_12 {dimension_numbers = #tpu.dot_dimension_numbers<[1], [0], [0], [1], [0, 0, 1, 1], [], []>} : vector<8x32xf32>, vector<32x128xf32>, vector<8x128xf32> -> vector<8x128xf32>
    %14 = arith.addf %12, %13 : vector<8x128xf32>
    %15 = arith.negf %14 : vector<8x128xf32>
    %16 = math.exp %15 : vector<8x128xf32>
    %cst_13 = arith.constant 1.000000e+00 : f32
    %17 = vector.broadcast %cst_13 : f32 to vector<8x128xf32>
    %18 = arith.addf %17, %16 : vector<8x128xf32>
    %19 = arith.divf %17, %18 : vector<8x128xf32>
    %20 = math.tanh %14 : vector<8x128xf32>
    %21 = vector.extract_strided_slice %19 {offsets = [0, 0], sizes = [8, 32], strides = [1, 1]} : vector<8x128xf32> to vector<8x32xf32>
    %22 = vector.extract_strided_slice %19 {offsets = [0, 32], sizes = [8, 32], strides = [1, 1]} : vector<8x128xf32> to vector<8x32xf32>
    %23 = vector.extract_strided_slice %20 {offsets = [0, 64], sizes = [8, 32], strides = [1, 1]} : vector<8x128xf32> to vector<8x32xf32>
    %24 = vector.extract_strided_slice %19 {offsets = [0, 96], sizes = [8, 32], strides = [1, 1]} : vector<8x128xf32> to vector<8x32xf32>
    %25 = arith.mulf %22, %9 : vector<8x32xf32>
    %26 = arith.mulf %21, %23 : vector<8x32xf32>
    %27 = arith.addf %25, %26 : vector<8x32xf32>
    %28 = math.tanh %27 : vector<8x32xf32>
    %29 = arith.mulf %24, %28 : vector<8x32xf32>
    %30 = arith.index_cast %10 : i32 to index
    %c0_14 = arith.constant 0 : index
    %31 = vector.load %arg9[%30, %c0_14] : memref<64x32xf32, #tpu.memory_space<vmem>>, vector<8x32xf32>
    tpu.vector_store %arg9[%30, %c0_14], %29 {strides = array<i32>} : memref<64x32xf32, #tpu.memory_space<vmem>>, vector<8x32xf32>,
    %c1_i32 = arith.constant 1 : i32
    %c8_i32_15 = arith.constant 8 : i32
    %32 = arith.muli %c1_i32, %c8_i32_15 : i32
    %33 = arith.index_cast %32 : i32 to index
    %c0_16 = arith.constant 0 : index
    %34 = vector.load %arg8[%33, %c0_16] : memref<64x128xf32, #tpu.memory_space<vmem>>, vector<8x128xf32>
    %cst_17 = arith.constant dense<0.000000e+00> : vector<8x128xf32>
    %35 = tpu.matmul %29, %7, %cst_17 {dimension_numbers = #tpu.dot_dimension_numbers<[1], [0], [0], [1], [0, 0, 1, 1], [], []>} : vector<8x32xf32>, vector<32x128xf32>, vector<8x128xf32> -> vector<8x128xf32>
    %36 = arith.addf %34, %35 : vector<8x128xf32>
    %37 = arith.negf %36 : vector<8x128xf32>
    %38 = math.exp %37 : vector<8x128xf32>
    %cst_18 = arith.constant 1.000000e+00 : f32
    %39 = vector.broadcast %cst_18 : f32 to vector<8x128xf32>
    %40 = arith.addf %39, %38 : vector<8x128xf32>
    %41 = arith.divf %39, %40 : vector<8x128xf32>
    %42 = math.tanh %36 : vector<8x128xf32>
    %43 = vector.extract_strided_slice %41 {offsets = [0, 0], sizes = [8, 32], strides = [1, 1]} : vector<8x128xf32> to vector<8x32xf32>
    %44 = vector.extract_strided_slice %41 {offsets = [0, 32], sizes = [8, 32], strides = [1, 1]} : vector<8x128xf32> to vector<8x32xf32>
    %45 = vector.extract_strided_slice %42 {offsets = [0, 64], sizes = [8, 32], strides = [1, 1]} : vector<8x128xf32> to vector<8x32xf32>
    %46 = vector.extract_strided_slice %41 {offsets = [0, 96], sizes = [8, 32], strides = [1, 1]} : vector<8x128xf32> to vector<8x32xf32>
    %47 = arith.mulf %44, %27 : vector<8x32xf32>
    %48 = arith.mulf %43, %45 : vector<8x32xf32>
    %49 = arith.addf %47, %48 : vector<8x32xf32>
    %50 = math.tanh %49 : vector<8x32xf32>
    %51 = arith.mulf %46, %50 : vector<8x32xf32>
    %52 = arith.index_cast %32 : i32 to index
    %c0_19 = arith.constant 0 : index
    %53 = vector.load %arg9[%52, %c0_19] : memref<64x32xf32, #tpu.memory_space<vmem>>, vector<8x32xf32>
    tpu.vector_store %arg9[%52, %c0_19], %51 {strides = array<i32>} : memref<64x32xf32, #tpu.memory_space<vmem>>, vector<8x32xf32>,
    %c2_i32 = arith.constant 2 : i32
    %c8_i32_20 = arith.constant 8 : i32
    %54 = arith.muli %c2_i32, %c8_i32_20 : i32
    %55 = arith.index_cast %54 : i32 to index
    %c0_21 = arith.constant 0 : index
    %56 = vector.load %arg8[%55, %c0_21] : memref<64x128xf32, #tpu.memory_space<vmem>>, vector<8x128xf32>
    %cst_22 = arith.constant dense<0.000000e+00> : vector<8x128xf32>
    %57 = tpu.matmul %51, %7, %cst_22 {dimension_numbers = #tpu.dot_dimension_numbers<[1], [0], [0], [1], [0, 0, 1, 1], [], []>} : vector<8x32xf32>, vector<32x128xf32>, vector<8x128xf32> -> vector<8x128xf32>
    %58 = arith.addf %56, %57 : vector<8x128xf32>
    %59 = arith.negf %58 : vector<8x128xf32>
    %60 = math.exp %59 : vector<8x128xf32>
    %cst_23 = arith.constant 1.000000e+00 : f32
    %61 = vector.broadcast %cst_23 : f32 to vector<8x128xf32>
    %62 = arith.addf %61, %60 : vector<8x128xf32>
    %63 = arith.divf %61, %62 : vector<8x128xf32>
    %64 = math.tanh %58 : vector<8x128xf32>
    %65 = vector.extract_strided_slice %63 {offsets = [0, 0], sizes = [8, 32], strides = [1, 1]} : vector<8x128xf32> to vector<8x32xf32>
    %66 = vector.extract_strided_slice %63 {offsets = [0, 32], sizes = [8, 32], strides = [1, 1]} : vector<8x128xf32> to vector<8x32xf32>
    %67 = vector.extract_strided_slice %64 {offsets = [0, 64], sizes = [8, 32], strides = [1, 1]} : vector<8x128xf32> to vector<8x32xf32>
    %68 = vector.extract_strided_slice %63 {offsets = [0, 96], sizes = [8, 32], strides = [1, 1]} : vector<8x128xf32> to vector<8x32xf32>
    %69 = arith.mulf %66, %49 : vector<8x32xf32>
    %70 = arith.mulf %65, %67 : vector<8x32xf32>
    %71 = arith.addf %69, %70 : vector<8x32xf32>
    %72 = math.tanh %71 : vector<8x32xf32>
    %73 = arith.mulf %68, %72 : vector<8x32xf32>
    %74 = arith.index_cast %54 : i32 to index
    %c0_24 = arith.constant 0 : index
    %75 = vector.load %arg9[%74, %c0_24] : memref<64x32xf32, #tpu.memory_space<vmem>>, vector<8x32xf32>
    tpu.vector_store %arg9[%74, %c0_24], %73 {strides = array<i32>} : memref<64x32xf32, #tpu.memory_space<vmem>>, vector<8x32xf32>,
    %c3_i32 = arith.constant 3 : i32
    %c8_i32_25 = arith.constant 8 : i32
    %76 = arith.muli %c3_i32, %c8_i32_25 : i32
    %77 = arith.index_cast %76 : i32 to index
    %c0_26 = arith.constant 0 : index
    %78 = vector.load %arg8[%77, %c0_26] : memref<64x128xf32, #tpu.memory_space<vmem>>, vector<8x128xf32>
    %cst_27 = arith.constant dense<0.000000e+00> : vector<8x128xf32>
    %79 = tpu.matmul %73, %7, %cst_27 {dimension_numbers = #tpu.dot_dimension_numbers<[1], [0], [0], [1], [0, 0, 1, 1], [], []>} : vector<8x32xf32>, vector<32x128xf32>, vector<8x128xf32> -> vector<8x128xf32>
    %80 = arith.addf %78, %79 : vector<8x128xf32>
    %81 = arith.negf %80 : vector<8x128xf32>
    %82 = math.exp %81 : vector<8x128xf32>
    %cst_28 = arith.constant 1.000000e+00 : f32
    %83 = vector.broadcast %cst_28 : f32 to vector<8x128xf32>
    %84 = arith.addf %83, %82 : vector<8x128xf32>
    %85 = arith.divf %83, %84 : vector<8x128xf32>
    %86 = math.tanh %80 : vector<8x128xf32>
    %87 = vector.extract_strided_slice %85 {offsets = [0, 0], sizes = [8, 32], strides = [1, 1]} : vector<8x128xf32> to vector<8x32xf32>
    %88 = vector.extract_strided_slice %85 {offsets = [0, 32], sizes = [8, 32], strides = [1, 1]} : vector<8x128xf32> to vector<8x32xf32>
    %89 = vector.extract_strided_slice %86 {offsets = [0, 64], sizes = [8, 32], strides = [1, 1]} : vector<8x128xf32> to vector<8x32xf32>
    %90 = vector.extract_strided_slice %85 {offsets = [0, 96], sizes = [8, 32], strides = [1, 1]} : vector<8x128xf32> to vector<8x32xf32>
    %91 = arith.mulf %88, %71 : vector<8x32xf32>
    %92 = arith.mulf %87, %89 : vector<8x32xf32>
    %93 = arith.addf %91, %92 : vector<8x32xf32>
    %94 = math.tanh %93 : vector<8x32xf32>
    %95 = arith.mulf %90, %94 : vector<8x32xf32>
    %96 = arith.index_cast %76 : i32 to index
    %c0_29 = arith.constant 0 : index
    %97 = vector.load %arg9[%96, %c0_29] : memref<64x32xf32, #tpu.memory_space<vmem>>, vector<8x32xf32>
    tpu.vector_store %arg9[%96, %c0_29], %95 {strides = array<i32>} : memref<64x32xf32, #tpu.memory_space<vmem>>, vector<8x32xf32>,
    %c4_i32 = arith.constant 4 : i32
    %c8_i32_30 = arith.constant 8 : i32
    %98 = arith.muli %c4_i32, %c8_i32_30 : i32
    %99 = arith.index_cast %98 : i32 to index
    %c0_31 = arith.constant 0 : index
    %100 = vector.load %arg8[%99, %c0_31] : memref<64x128xf32, #tpu.memory_space<vmem>>, vector<8x128xf32>
    %cst_32 = arith.constant dense<0.000000e+00> : vector<8x128xf32>
    %101 = tpu.matmul %95, %7, %cst_32 {dimension_numbers = #tpu.dot_dimension_numbers<[1], [0], [0], [1], [0, 0, 1, 1], [], []>} : vector<8x32xf32>, vector<32x128xf32>, vector<8x128xf32> -> vector<8x128xf32>
    %102 = arith.addf %100, %101 : vector<8x128xf32>
    %103 = arith.negf %102 : vector<8x128xf32>
    %104 = math.exp %103 : vector<8x128xf32>
    %cst_33 = arith.constant 1.000000e+00 : f32
    %105 = vector.broadcast %cst_33 : f32 to vector<8x128xf32>
    %106 = arith.addf %105, %104 : vector<8x128xf32>
    %107 = arith.divf %105, %106 : vector<8x128xf32>
    %108 = math.tanh %102 : vector<8x128xf32>
    %109 = vector.extract_strided_slice %107 {offsets = [0, 0], sizes = [8, 32], strides = [1, 1]} : vector<8x128xf32> to vector<8x32xf32>
    %110 = vector.extract_strided_slice %107 {offsets = [0, 32], sizes = [8, 32], strides = [1, 1]} : vector<8x128xf32> to vector<8x32xf32>
    %111 = vector.extract_strided_slice %108 {offsets = [0, 64], sizes = [8, 32], strides = [1, 1]} : vector<8x128xf32> to vector<8x32xf32>
    %112 = vector.extract_strided_slice %107 {offsets = [0, 96], sizes = [8, 32], strides = [1, 1]} : vector<8x128xf32> to vector<8x32xf32>
    %113 = arith.mulf %110, %93 : vector<8x32xf32>
    %114 = arith.mulf %109, %111 : vector<8x32xf32>
    %115 = arith.addf %113, %114 : vector<8x32xf32>
    %116 = math.tanh %115 : vector<8x32xf32>
    %117 = arith.mulf %112, %116 : vector<8x32xf32>
    %118 = arith.index_cast %98 : i32 to index
    %c0_34 = arith.constant 0 : index
    %119 = vector.load %arg9[%118, %c0_34] : memref<64x32xf32, #tpu.memory_space<vmem>>, vector<8x32xf32>
    tpu.vector_store %arg9[%118, %c0_34], %117 {strides = array<i32>} : memref<64x32xf32, #tpu.memory_space<vmem>>, vector<8x32xf32>,
    %c5_i32 = arith.constant 5 : i32
    %c8_i32_35 = arith.constant 8 : i32
    %120 = arith.muli %c5_i32, %c8_i32_35 : i32
    %121 = arith.index_cast %120 : i32 to index
    %c0_36 = arith.constant 0 : index
    %122 = vector.load %arg8[%121, %c0_36] : memref<64x128xf32, #tpu.memory_space<vmem>>, vector<8x128xf32>
    %cst_37 = arith.constant dense<0.000000e+00> : vector<8x128xf32>
    %123 = tpu.matmul %117, %7, %cst_37 {dimension_numbers = #tpu.dot_dimension_numbers<[1], [0], [0], [1], [0, 0, 1, 1], [], []>} : vector<8x32xf32>, vector<32x128xf32>, vector<8x128xf32> -> vector<8x128xf32>
    %124 = arith.addf %122, %123 : vector<8x128xf32>
    %125 = arith.negf %124 : vector<8x128xf32>
    %126 = math.exp %125 : vector<8x128xf32>
    %cst_38 = arith.constant 1.000000e+00 : f32
    %127 = vector.broadcast %cst_38 : f32 to vector<8x128xf32>
    %128 = arith.addf %127, %126 : vector<8x128xf32>
    %129 = arith.divf %127, %128 : vector<8x128xf32>
    %130 = math.tanh %124 : vector<8x128xf32>
    %131 = vector.extract_strided_slice %129 {offsets = [0, 0], sizes = [8, 32], strides = [1, 1]} : vector<8x128xf32> to vector<8x32xf32>
    %132 = vector.extract_strided_slice %129 {offsets = [0, 32], sizes = [8, 32], strides = [1, 1]} : vector<8x128xf32> to vector<8x32xf32>
    %133 = vector.extract_strided_slice %130 {offsets = [0, 64], sizes = [8, 32], strides = [1, 1]} : vector<8x128xf32> to vector<8x32xf32>
    %134 = vector.extract_strided_slice %129 {offsets = [0, 96], sizes = [8, 32], strides = [1, 1]} : vector<8x128xf32> to vector<8x32xf32>
    %135 = arith.mulf %132, %115 : vector<8x32xf32>
    %136 = arith.mulf %131, %133 : vector<8x32xf32>
    %137 = arith.addf %135, %136 : vector<8x32xf32>
    %138 = math.tanh %137 : vector<8x32xf32>
    %139 = arith.mulf %134, %138 : vector<8x32xf32>
    %140 = arith.index_cast %120 : i32 to index
    %c0_39 = arith.constant 0 : index
    %141 = vector.load %arg9[%140, %c0_39] : memref<64x32xf32, #tpu.memory_space<vmem>>, vector<8x32xf32>
    tpu.vector_store %arg9[%140, %c0_39], %139 {strides = array<i32>} : memref<64x32xf32, #tpu.memory_space<vmem>>, vector<8x32xf32>,
    %c6_i32 = arith.constant 6 : i32
    %c8_i32_40 = arith.constant 8 : i32
    %142 = arith.muli %c6_i32, %c8_i32_40 : i32
    %143 = arith.index_cast %142 : i32 to index
    %c0_41 = arith.constant 0 : index
    %144 = vector.load %arg8[%143, %c0_41] : memref<64x128xf32, #tpu.memory_space<vmem>>, vector<8x128xf32>
    %cst_42 = arith.constant dense<0.000000e+00> : vector<8x128xf32>
    %145 = tpu.matmul %139, %7, %cst_42 {dimension_numbers = #tpu.dot_dimension_numbers<[1], [0], [0], [1], [0, 0, 1, 1], [], []>} : vector<8x32xf32>, vector<32x128xf32>, vector<8x128xf32> -> vector<8x128xf32>
    %146 = arith.addf %144, %145 : vector<8x128xf32>
    %147 = arith.negf %146 : vector<8x128xf32>
    %148 = math.exp %147 : vector<8x128xf32>
    %cst_43 = arith.constant 1.000000e+00 : f32
    %149 = vector.broadcast %cst_43 : f32 to vector<8x128xf32>
    %150 = arith.addf %149, %148 : vector<8x128xf32>
    %151 = arith.divf %149, %150 : vector<8x128xf32>
    %152 = math.tanh %146 : vector<8x128xf32>
    %153 = vector.extract_strided_slice %151 {offsets = [0, 0], sizes = [8, 32], strides = [1, 1]} : vector<8x128xf32> to vector<8x32xf32>
    %154 = vector.extract_strided_slice %151 {offsets = [0, 32], sizes = [8, 32], strides = [1, 1]} : vector<8x128xf32> to vector<8x32xf32>
    %155 = vector.extract_strided_slice %152 {offsets = [0, 64], sizes = [8, 32], strides = [1, 1]} : vector<8x128xf32> to vector<8x32xf32>
    %156 = vector.extract_strided_slice %151 {offsets = [0, 96], sizes = [8, 32], strides = [1, 1]} : vector<8x128xf32> to vector<8x32xf32>
    %157 = arith.mulf %154, %137 : vector<8x32xf32>
    %158 = arith.mulf %153, %155 : vector<8x32xf32>
    %159 = arith.addf %157, %158 : vector<8x32xf32>
    %160 = math.tanh %159 : vector<8x32xf32>
    %161 = arith.mulf %156, %160 : vector<8x32xf32>
    %162 = arith.index_cast %142 : i32 to index
    %c0_44 = arith.constant 0 : index
    %163 = vector.load %arg9[%162, %c0_44] : memref<64x32xf32, #tpu.memory_space<vmem>>, vector<8x32xf32>
    tpu.vector_store %arg9[%162, %c0_44], %161 {strides = array<i32>} : memref<64x32xf32, #tpu.memory_space<vmem>>, vector<8x32xf32>,
    %c7_i32 = arith.constant 7 : i32
    %c8_i32_45 = arith.constant 8 : i32
    %164 = arith.muli %c7_i32, %c8_i32_45 : i32
    %165 = arith.index_cast %164 : i32 to index
    %c0_46 = arith.constant 0 : index
    %166 = vector.load %arg8[%165, %c0_46] : memref<64x128xf32, #tpu.memory_space<vmem>>, vector<8x128xf32>
    %cst_47 = arith.constant dense<0.000000e+00> : vector<8x128xf32>
    %167 = tpu.matmul %161, %7, %cst_47 {dimension_numbers = #tpu.dot_dimension_numbers<[1], [0], [0], [1], [0, 0, 1, 1], [], []>} : vector<8x32xf32>, vector<32x128xf32>, vector<8x128xf32> -> vector<8x128xf32>
    %168 = arith.addf %166, %167 : vector<8x128xf32>
    %169 = arith.negf %168 : vector<8x128xf32>
    %170 = math.exp %169 : vector<8x128xf32>
    %cst_48 = arith.constant 1.000000e+00 : f32
    %171 = vector.broadcast %cst_48 : f32 to vector<8x128xf32>
    %172 = arith.addf %171, %170 : vector<8x128xf32>
    %173 = arith.divf %171, %172 : vector<8x128xf32>
    %174 = math.tanh %168 : vector<8x128xf32>
    %175 = vector.extract_strided_slice %173 {offsets = [0, 0], sizes = [8, 32], strides = [1, 1]} : vector<8x128xf32> to vector<8x32xf32>
    %176 = vector.extract_strided_slice %173 {offsets = [0, 32], sizes = [8, 32], strides = [1, 1]} : vector<8x128xf32> to vector<8x32xf32>
    %177 = vector.extract_strided_slice %174 {offsets = [0, 64], sizes = [8, 32], strides = [1, 1]} : vector<8x128xf32> to vector<8x32xf32>
    %178 = vector.extract_strided_slice %173 {offsets = [0, 96], sizes = [8, 32], strides = [1, 1]} : vector<8x128xf32> to vector<8x32xf32>
    %179 = arith.mulf %176, %159 : vector<8x32xf32>
    %180 = arith.mulf %175, %177 : vector<8x32xf32>
    %181 = arith.addf %179, %180 : vector<8x32xf32>
    %182 = math.tanh %181 : vector<8x32xf32>
    %183 = arith.mulf %178, %182 : vector<8x32xf32>
    %184 = arith.index_cast %164 : i32 to index
    %c0_49 = arith.constant 0 : index
    %185 = vector.load %arg9[%184, %c0_49] : memref<64x32xf32, #tpu.memory_space<vmem>>, vector<8x32xf32>
    tpu.vector_store %arg9[%184, %c0_49], %183 {strides = array<i32>} : memref<64x32xf32, #tpu.memory_space<vmem>>, vector<8x32xf32>,
    %c8_i32_50 = arith.constant 8 : i32
    %c0_51 = arith.constant 0 : index
    %c0_52 = arith.constant 0 : index
    %186 = vector.load %arg9[%c0_51, %c0_52] : memref<64x32xf32, #tpu.memory_space<vmem>>, vector<64x32xf32>
    %c0_53 = arith.constant 0 : index
    %c0_54 = arith.constant 0 : index
    %187 = vector.load %arg5[%c0_53, %c0_54] : memref<32x16xf32, #tpu.memory_space<vmem>>, vector<32x16xf32>
    %cst_55 = arith.constant dense<0.000000e+00> : vector<64x16xf32>
    %188 = tpu.matmul %186, %187, %cst_55 {dimension_numbers = #tpu.dot_dimension_numbers<[1], [0], [0], [1], [0, 0, 1, 1], [], []>} : vector<64x32xf32>, vector<32x16xf32>, vector<64x16xf32> -> vector<64x16xf32>
    %c0_56 = arith.constant 0 : index
    %c0_57 = arith.constant 0 : index
    %189 = vector.load %arg6[%c0_56, %c0_57] : memref<1x16xf32, #tpu.memory_space<vmem>>, vector<1x16xf32>
    %190 = vector.broadcast %189 : vector<1x16xf32> to vector<64x16xf32>
    %191 = arith.addf %188, %190 : vector<64x16xf32>
    %c0_58 = arith.constant 0 : index
    %c0_59 = arith.constant 0 : index
    %192 = vector.load %arg7[%c0_58, %c0_59] : memref<64x16xf32, #tpu.memory_space<vmem>>, vector<64x16xf32>
    tpu.vector_store %arg7[%c0_58, %c0_59], %191 {strides = array<i32>} : memref<64x16xf32, #tpu.memory_space<vmem>>, vector<64x16xf32>,
    return
  }
  func.func @transform_0(%arg0: i32) -> (i32, i32) {
    %c0_i32 = arith.constant 0 : i32
    %c0_i32_0 = arith.constant 0 : i32
    %c0_i32_1 = arith.constant 0 : i32
    return %c0_i32, %c0_i32_0 : i32, i32
  }
  func.func @transform_1(%arg0: i32) -> (i32, i32) {
    %c0_i32 = arith.constant 0 : i32
    %c0_i32_0 = arith.constant 0 : i32
    %c0_i32_1 = arith.constant 0 : i32
    return %c0_i32, %c0_i32_0 : i32, i32
  }
  func.func @transform_2(%arg0: i32) -> (i32, i32) {
    %c0_i32 = arith.constant 0 : i32
    %c0_i32_0 = arith.constant 0 : i32
    %c0_i32_1 = arith.constant 0 : i32
    return %c0_i32, %c0_i32_0 : i32, i32
  }
  func.func @transform_3(%arg0: i32) -> (i32, i32) {
    %c0_i32 = arith.constant 0 : i32
    %c0_i32_0 = arith.constant 0 : i32
    %c0_i32_1 = arith.constant 0 : i32
    return %c0_i32, %c0_i32_0 : i32, i32
  }
  func.func @transform_4(%arg0: i32) -> (i32, i32) {
    %c0_i32 = arith.constant 0 : i32
    %c0_i32_0 = arith.constant 0 : i32
    %c0_i32_1 = arith.constant 0 : i32
    return %c0_i32, %c0_i32_0 : i32, i32
  }
  func.func @transform_5(%arg0: i32) -> (i32, i32) {
    %c0_i32 = arith.constant 0 : i32
    %c0_i32_0 = arith.constant 0 : i32
    %c0_i32_1 = arith.constant 0 : i32
    return %c0_i32, %c0_i32_0 : i32, i32
  }
  func.func @transform_6(%arg0: i32) -> (i32, i32) {
    %c0_i32 = arith.constant 0 : i32
    %c0_i32_0 = arith.constant 0 : i32
    %c0_i32_1 = arith.constant 0 : i32
    return %c0_i32, %c0_i32_0 : i32, i32
  }
}

</mosaic_0001>

<llo_original>
// kernel: tpu_custom_call.1
$region0: #{tpu_custom_call.1}
  #allocation0 [shape = 'u32[]', space=smem, size = 0x4, offset = 0x4, fixed_abs, tag = 'smem constant byte address 0x4 - core index']
  #allocation1 [shape = 'u32[144,128]{1,0:T(1,128)}', space=vmem, size = 0x12000, scoped, tag = 'internal scratch']
  #allocation2 [shape = 'f32[64,128]{1,0:T(8,128)}', space=vmem, size = 0x8000, scoped, tag = 'scratch operand']
  #allocation3 [shape = 'f32[64,32]{1,0:T(8,128)}', space=vmem, size = 0x8000, scoped, tag = 'scratch operand']
  %s0 = inlined_call_operand.vmem [shape: f32[64,16], index: 0, kind: input, shape index: {}]
  %s1 = inlined_call_operand.vmem [shape: f32[16,128], index: 1, kind: input, shape index: {}]
  %s2 = inlined_call_operand.vmem [shape: f32[32,128], index: 2, kind: input, shape index: {}]
  %s3 = inlined_call_operand.vmem [shape: f32[1,128], index: 3, kind: input, shape index: {}]
  %s4 = inlined_call_operand.vmem [shape: f32[32,16], index: 4, kind: input, shape index: {}]
  %s5 = inlined_call_operand.vmem [shape: f32[1,16], index: 5, kind: input, shape index: {}]
  %s6 = inlined_call_operand.vmem [shape: f32[64,16], index: 6, kind: output, shape index: {}]
  %s7 = sld [smem:[#allocation0]]
  $region34: #{tpu_custom_call.1} parent=0
    _
  %s9 = ssub.s32 1, %s7
  %s10 = scalar_select 0, %s9, %s7
  // Predicated region
  $region2: #{tpu_custom_call.1} parent=0 // pred_check
    _
  $region3: #{tpu_custom_call.1} parent=0 // pred_check_branch
    %12 = sbr.rel (0) target = $region5
  $region4: #{tpu_custom_call.1} parent=0 // pred_region
    _
  $region5: #{tpu_custom_call.1} parent=0 // pred_fallthru
    _
  // Predicated region
  $region6: #{tpu_custom_call.1} parent=0 // pred_check
    _
  $region7: #{tpu_custom_call.1} parent=0 // pred_check_branch
    %14 = sbr.rel (0) target = $region9
  $region8: #{tpu_custom_call.1} parent=0 // pred_region
    _
  $region9: #{tpu_custom_call.1} parent=0 // pred_fallthru
    _
  // Predicated region
  $region10: #{tpu_custom_call.1} parent=0 // pred_check
    _
  $region11: #{tpu_custom_call.1} parent=0 // pred_check_branch
    %16 = sbr.rel (0) target = $region13
  $region12: #{tpu_custom_call.1} parent=0 // pred_region
    _
  $region13: #{tpu_custom_call.1} parent=0 // pred_fallthru
    _
  // Predicated region
  $region14: #{tpu_custom_call.1} parent=0 // pred_check
    _
  $region15: #{tpu_custom_call.1} parent=0 // pred_check_branch
    %18 = sbr.rel (0) target = $region17
  $region16: #{tpu_custom_call.1} parent=0 // pred_region
    _
  $region17: #{tpu_custom_call.1} parent=0 // pred_fallthru
    _
  // Predicated region
  $region18: #{tpu_custom_call.1} parent=0 // pred_check
    _
  $region19: #{tpu_custom_call.1} parent=0 // pred_check_branch
    %20 = sbr.rel (0) target = $region21
  $region20: #{tpu_custom_call.1} parent=0 // pred_region
    _
  $region21: #{tpu_custom_call.1} parent=0 // pred_fallthru
    _
  // Predicated region
  $region22: #{tpu_custom_call.1} parent=0 // pred_check
    _
  $region23: #{tpu_custom_call.1} parent=0 // pred_check_branch
    %22 = sbr.rel (0) target = $region25
  $region24: #{tpu_custom_call.1} parent=0 // pred_region
    _
  $region25: #{tpu_custom_call.1} parent=0 // pred_fallthru
    _
  %v23 = vld [vmem:[%s0] sm:$0xff]
  %v24 = vld [vmem:[%s0 + $0x8] sm:$0xff]
  %v25 = vld [vmem:[%s0 + $0x10] sm:$0xff]
  %v26 = vld [vmem:[%s0 + $0x18] sm:$0xff]
  %v27 = vld [vmem:[%s0 + $0x20] sm:$0xff]
  %v28 = vld [vmem:[%s0 + $0x28] sm:$0xff]
  %v29 = vld [vmem:[%s0 + $0x30] sm:$0xff]
  %v30 = vld [vmem:[%s0 + $0x38] sm:$0xff]
  %v31 = vld [vmem:[%s1] sm:$0xff]
  %v32 = vld [vmem:[%s1 + $0x8] sm:$0xff]
  %v33 = vld [vmem:[%s3] sm:$0x1]
  %v35 = vlaneseq
  %v36 = vshrl.u32 %v35, 7
  %v37 = vsub.s32 0, %v36
  %v38 = vrot.slane %v33, %v37
  %vm40 = vcmask 130048
  %v42 = vsel %vm40, %v23, 0
  %v45 = vsel %vm40, %v24, 0
  %v48 = vsel %vm40, %v25, 0
  %v51 = vsel %vm40, %v26, 0
  %v54 = vsel %vm40, %v27, 0
  %v57 = vsel %vm40, %v28, 0
  %v60 = vsel %vm40, %v29, 0
  %v63 = vsel %vm40, %v30, 0
  %65 = vmatprep.subr.mxu0 0.0
  %66 = vmatpush1.msra.mxu0 %v31
  %67 = vmatprep.subr.mxu0 0.0
  %68 = vmatpush1.msra.mxu0 %v32
  %69 = vmatprep.subr.mxu0 0.0
  %70 = vmatpush1.msra.mxu0 0.0
  %71 = vmatprep.subr.mxu0 0.0
  %72 = vmatpush1.msra.mxu0 0.0
  %73 = vmatprep.subr.mxu0 0.0
  %74 = vmatpush1.msra.mxu0 0.0
  %75 = vmatprep.subr.mxu0 0.0
  %76 = vmatpush1.msra.mxu0 0.0
  %77 = vmatprep.subr.mxu0 0.0
  %78 = vmatpush1.msra.mxu0 0.0
  %79 = vmatprep.subr.mxu0 0.0
  %80 = vmatpush1.msra.mxu0 0.0
  %81 = vmatprep.subr.mxu0 0.0
  %82 = vmatpush1.msra.mxu0 0.0
  %83 = vmatprep.subr.mxu0 0.0
  %84 = vmatpush1.msra.mxu0 0.0
  %85 = vmatprep.subr.mxu0 0.0
  %86 = vmatpush1.msra.mxu0 0.0
  %87 = vmatprep.subr.mxu0 0.0
  %88 = vmatpush1.msra.mxu0 0.0
  %89 = vmatprep.subr.mxu0 0.0
  %90 = vmatpush1.msra.mxu0 0.0
  %91 = vmatprep.subr.mxu0 0.0
  %92 = vmatpush1.msra.mxu0 0.0
  %93 = vmatprep.subr.mxu0 0.0
  %94 = vmatpush1.msra.mxu0 0.0
  %95 = vmatprep.subr.mxu0 0.0
  %96 = vmatpush1.msra.mxu0 0.0
  %97 = vmatprep.subr.mxu0 0.0
  %98 = vmatpush1.msra.mxu0 0.0
  %99 = vmatprep.subr.mxu0 0.0
  %100 = vmatpush1.msra.mxu0 0.0
  %101 = vmatprep.subr.mxu0 0.0
  %102 = vmatpush1.msra.mxu0 0.0
  %103 = vmatprep.subr.mxu0 0.0
  %104 = vmatpush1.msra.mxu0 0.0
  %105 = vmatprep.subr.mxu0 0.0
  %106 = vmatpush1.msra.mxu0 0.0
  %107 = vmatprep.subr.mxu0 0.0
  %108 = vmatpush1.msra.mxu0 0.0
  %109 = vmatprep.subr.mxu0 0.0
  %110 = vmatpush1.msra.mxu0 0.0
  %111 = vmatprep.subr.mxu0 0.0
  %112 = vmatpush1.msra.mxu0 0.0
  %113 = vmatprep.subr.mxu0 0.0
  %114 = vmatpush1.msra.mxu0 0.0
  %115 = vmatprep.subr.mxu0 0.0
  %116 = vmatpush1.msra.mxu0 0.0
  %117 = vmatprep.subr.mxu0 0.0
  %118 = vmatpush1.msra.mxu0 0.0
  %119 = vmatprep.subr.mxu0 0.0
  %120 = vmatpush1.msra.mxu0 0.0
  %121 = vmatprep.subr.mxu0 0.0
  %122 = vmatpush1.msra.mxu0 0.0
  %123 = vmatprep.subr.mxu0 0.0
  %124 = vmatpush1.msra.mxu0 0.0
  %125 = vmatprep.subr.mxu0 0.0
  %126 = vmatpush1.msra.mxu0 0.0
  %127 = vmatprep.subr.mxu0 0.0
  %128 = vmatpush1.msra.mxu0 0.0
  %129 = vmatprep.mubr.f32.mxu0 0.0
  %130 = vmatmul.mubr.f32.gmra.mrb[0].mxu0 %v42
  %v131 = vpop.f32.mrb[0].mxu0
  %v132 = vadd.f32 %v38, %v131
  %v133 = vpop.f32.mrb[0].mxu0
  %134 = vmatprep.mubr.f32.mxu0 0.0
  %135 = vmatmul.mubr.f32.gmra.mrb[0].mxu0 %v45
  %v136 = vpop.f32.mrb[0].mxu0
  %v137 = vadd.f32 %v38, %v136
  %v138 = vpop.f32.mrb[0].mxu0
  %139 = vmatprep.mubr.f32.mxu0 0.0
  %140 = vmatmul.mubr.f32.gmra.mrb[0].mxu0 %v48
  %v141 = vpop.f32.mrb[0].mxu0
  %v142 = vadd.f32 %v38, %v141
  %v143 = vpop.f32.mrb[0].mxu0
  %144 = vmatprep.mubr.f32.mxu0 0.0
  %145 = vmatmul.mubr.f32.gmra.mrb[0].mxu0 %v51
  %v146 = vpop.f32.mrb[0].mxu0
  %v147 = vadd.f32 %v38, %v146
  %v148 = vpop.f32.mrb[0].mxu0
  %149 = vmatprep.mubr.f32.mxu0 0.0
  %150 = vmatmul.mubr.f32.gmra.mrb[0].mxu0 %v54
  %v151 = vpop.f32.mrb[0].mxu0
  %v152 = vadd.f32 %v38, %v151
  %v153 = vpop.f32.mrb[0].mxu0
  %154 = vmatprep.mubr.f32.mxu0 0.0
  %155 = vmatmul.mubr.f32.gmra.mrb[0].mxu0 %v57
  %v156 = vpop.f32.mrb[0].mxu0
  %v157 = vadd.f32 %v38, %v156
  %v158 = vpop.f32.mrb[0].mxu0
  %159 = vmatprep.mubr.f32.mxu0 0.0
  %160 = vmatmul.mubr.f32.gmra.mrb[0].mxu0 %v60
  %v161 = vpop.f32.mrb[0].mxu0
  %v162 = vadd.f32 %v38, %v161
  %v163 = vpop.f32.mrb[0].mxu0
  %164 = vmatprep.mubr.f32.mxu0 0.0
  %165 = vmatmul.mubr.f32.gmra.mrb[0].mxu0 %v63
  %v166 = vpop.f32.mrb[0].mxu0
  %v167 = vadd.f32 %v38, %v166
  %v168 = vpop.f32.mrb[0].mxu0
  %169 = vdwg.mxu0
  %170 = vst [vmem:[#allocation2] sm:$0xff] %v132
  %171 = vst [vmem:[#allocation2 + $0x8] sm:$0xff] %v137
  %172 = vst [vmem:[#allocation2 + $0x10] sm:$0xff] %v142
  %173 = vst [vmem:[#allocation2 + $0x18] sm:$0xff] %v147
  %174 = vst [vmem:[#allocation2 + $0x20] sm:$0xff] %v152
  %175 = vst [vmem:[#allocation2 + $0x28] sm:$0xff] %v157
  %176 = vst [vmem:[#allocation2 + $0x30] sm:$0xff] %v162
  %177 = vst [vmem:[#allocation2 + $0x38] sm:$0xff] %v167
  %v178 = vld [vmem:[%s2] sm:$0xff]
  %v179 = vld [vmem:[%s2 + $0x8] sm:$0xff]
  %v180 = vld [vmem:[%s2 + $0x10] sm:$0xff]
  %v181 = vld [vmem:[%s2 + $0x18] sm:$0xff]
  %v182 = vld [vmem:[#allocation2] sm:$0xff]
  %vm183 = vcmask 261120
  %v185 = vsel %vm183, 0.0, 0
  %187 = vmatprep.subr.mxu0 0.0
  %188 = vmatpush1.msra.mxu0 %v178
  %189 = vmatprep.subr.mxu0 0.0
  %190 = vmatpush1.msra.mxu0 %v179
  %191 = vmatprep.subr.mxu0 0.0
  %192 = vmatpush1.msra.mxu0 %v180
  %193 = vmatprep.subr.mxu0 0.0
  %194 = vmatpush1.msra.mxu0 %v181
  %195 = vmatprep.subr.mxu0 0.0
  %196 = vmatpush1.msra.mxu0 0.0
  %197 = vmatprep.subr.mxu0 0.0
  %198 = vmatpush1.msra.mxu0 0.0
  %199 = vmatprep.subr.mxu0 0.0
  %200 = vmatpush1.msra.mxu0 0.0
  %201 = vmatprep.subr.mxu0 0.0
  %202 = vmatpush1.msra.mxu0 0.0
  %203 = vmatprep.subr.mxu0 0.0
  %204 = vmatpush1.msra.mxu0 0.0
  %205 = vmatprep.subr.mxu0 0.0
  %206 = vmatpush1.msra.mxu0 0.0
  %207 = vmatprep.subr.mxu0 0.0
  %208 = vmatpush1.msra.mxu0 0.0
  %209 = vmatprep.subr.mxu0 0.0
  %210 = vmatpush1.msra.mxu0 0.0
  %211 = vmatprep.subr.mxu0 0.0
  %212 = vmatpush1.msra.mxu0 0.0
  %213 = vmatprep.subr.mxu0 0.0
  %214 = vmatpush1.msra.mxu0 0.0
  %215 = vmatprep.subr.mxu0 0.0
  %216 = vmatpush1.msra.mxu0 0.0
  %217 = vmatprep.subr.mxu0 0.0
  %218 = vmatpush1.msra.mxu0 0.0
  %219 = vmatprep.subr.mxu0 0.0
  %220 = vmatpush1.msra.mxu0 0.0
  %221 = vmatprep.subr.mxu0 0.0
  %222 = vmatpush1.msra.mxu0 0.0
  %223 = vmatprep.subr.mxu0 0.0
  %224 = vmatpush1.msra.mxu0 0.0
  %225 = vmatprep.subr.mxu0 0.0
  %226 = vmatpush1.msra.mxu0 0.0
  %227 = vmatprep.subr.mxu0 0.0
  %228 = vmatpush1.msra.mxu0 0.0
  %229 = vmatprep.subr.mxu0 0.0
  %230 = vmatpush1.msra.mxu0 0.0
  %231 = vmatprep.subr.mxu0 0.0
  %232 = vmatpush1.msra.mxu0 0.0
  %233 = vmatprep.subr.mxu0 0.0
  %234 = vmatpush1.msra.mxu0 0.0
  %235 = vmatprep.subr.mxu0 0.0
  %236 = vmatpush1.msra.mxu0 0.0
  %237 = vmatprep.subr.mxu0 0.0
  %238 = vmatpush1.msra.mxu0 0.0
  %239 = vmatprep.subr.mxu0 0.0
  %240 = vmatpush1.msra.mxu0 0.0
  %241 = vmatprep.subr.mxu0 0.0
  %242 = vmatpush1.msra.mxu0 0.0
  %243 = vmatprep.subr.mxu0 0.0
  %244 = vmatpush1.msra.mxu0 0.0
  %245 = vmatprep.subr.mxu0 0.0
  %246 = vmatpush1.msra.mxu0 0.0
  %247 = vmatprep.subr.mxu0 0.0
  %248 = vmatpush1.msra.mxu0 0.0
  %249 = vmatprep.subr.mxu0 0.0
  %250 = vmatpush1.msra.mxu0 0.0
  %251 = vmatprep.mubr.f32.mxu0 0.0
  %252 = vmatmul.mubr.f32.gmra.mrb[0].mxu0 %v185
  %v253 = vpop.f32.mrb[0].mxu0
  %v254 = vadd.f32 0.0, %v253
  %v255 = vpop.f32.mrb[0].mxu0
  %256 = vdwg.mxu0
  %v257 = vadd.f32 %v182, %v254
  %v258 = vxor.u32 %v257, 2147483648
  %v259 = vmul.f32 %v258, 1.442695
  %v260 = vpow.pop %v259
  %v261 = vadd.f32 %v260, 1.0
  %v262 = vrcp.pop %v261
  %v263 = vmul.f32 1.0, %v262
  %v264 = vtanh.pop %v257
  %v265 = vmul.f32 %v263, 0.0
  %267 = vrot.lane.b32.xlu0 %v264, 64
  %v268 = vpop.permute.xlu0 %267
  %v270 = vmul.f32 %v263, %v268
  %272 = vrot.lane.b32.xlu0 %v270, 32
  %v273 = vpop.permute.xlu0 %272
  %v275 = vadd.f32 %v265, %v273
  %v276 = vtanh.pop %v275
  %278 = vrot.lane.b32.xlu0 %v276, 64
  %v279 = vpop.permute.xlu0 %278
  %v281 = vmul.f32 %v263, %v279
  %283 = vrot.lane.b32.xlu0 %v281, 32
  %v284 = vpop.permute.xlu0 %283
  %286 = vst.msk [vmem:[#allocation3] sm:$0xff] %vm183, %v284
  %v287 = vld [vmem:[#allocation2 + $0x8] sm:$0xff]
  %v288 = vsel %vm183, %v284, 0
  %290 = vmatprep.subr.mxu0 0.0
  %291 = vmatpush1.msra.mxu0 %v178
  %292 = vmatprep.subr.mxu0 0.0
  %293 = vmatpush1.msra.mxu0 %v179
  %294 = vmatprep.subr.mxu0 0.0
  %295 = vmatpush1.msra.mxu0 %v180
  %296 = vmatprep.subr.mxu0 0.0
  %297 = vmatpush1.msra.mxu0 %v181
  %298 = vmatprep.subr.mxu0 0.0
  %299 = vmatpush1.msra.mxu0 0.0
  %300 = vmatprep.subr.mxu0 0.0
  %301 = vmatpush1.msra.mxu0 0.0
  %302 = vmatprep.subr.mxu0 0.0
  %303 = vmatpush1.msra.mxu0 0.0
  %304 = vmatprep.subr.mxu0 0.0
  %305 = vmatpush1.msra.mxu0 0.0
  %306 = vmatprep.subr.mxu0 0.0
  %307 = vmatpush1.msra.mxu0 0.0
  %308 = vmatprep.subr.mxu0 0.0
  %309 = vmatpush1.msra.mxu0 0.0
  %310 = vmatprep.subr.mxu0 0.0
  %311 = vmatpush1.msra.mxu0 0.0
  %312 = vmatprep.subr.mxu0 0.0
  %313 = vmatpush1.msra.mxu0 0.0
  %314 = vmatprep.subr.mxu0 0.0
  %315 = vmatpush1.msra.mxu0 0.0
  %316 = vmatprep.subr.mxu0 0.0
  %317 = vmatpush1.msra.mxu0 0.0
  %318 = vmatprep.subr.mxu0 0.0
  %319 = vmatpush1.msra.mxu0 0.0
  %320 = vmatprep.subr.mxu0 0.0
  %321 = vmatpush1.msra.mxu0 0.0
  %322 = vmatprep.subr.mxu0 0.0
  %323 = vmatpush1.msra.mxu0 0.0
  %324 = vmatprep.subr.mxu0 0.0
  %325 = vmatpush1.msra.mxu0 0.0
  %326 = vmatprep.subr.mxu0 0.0
  %327 = vmatpush1.msra.mxu0 0.0
  %328 = vmatprep.subr.mxu0 0.0
  %329 = vmatpush1.msra.mxu0 0.0
  %330 = vmatprep.subr.mxu0 0.0
  %331 = vmatpush1.msra.mxu0 0.0
  %332 = vmatprep.subr.mxu0 0.0
  %333 = vmatpush1.msra.mxu0 0.0
  %334 = vmatprep.subr.mxu0 0.0
  %335 = vmatpush1.msra.mxu0 0.0
  %336 = vmatprep.subr.mxu0 0.0
  %337 = vmatpush1.msra.mxu0 0.0
  %338 = vmatprep.subr.mxu0 0.0
  %339 = vmatpush1.msra.mxu0 0.0
  %340 = vmatprep.subr.mxu0 0.0
  %341 = vmatpush1.msra.mxu0 0.0
  %342 = vmatprep.subr.mxu0 0.0
  %343 = vmatpush1.msra.mxu0 0.0
  %344 = vmatprep.subr.mxu0 0.0
  %345 = vmatpush1.msra.mxu0 0.0
  %346 = vmatprep.subr.mxu0 0.0
  %347 = vmatpush1.msra.mxu0 0.0
  %348 = vmatprep.subr.mxu0 0.0
  %349 = vmatpush1.msra.mxu0 0.0
  %350 = vmatprep.subr.mxu0 0.0
  %351 = vmatpush1.msra.mxu0 0.0
  %352 = vmatprep.subr.mxu0 0.0
  %353 = vmatpush1.msra.mxu0 0.0
  %354 = vmatprep.mubr.f32.mxu0 0.0
  %355 = vmatmul.mubr.f32.gmra.mrb[0].mxu0 %v288
  %v356 = vpop.f32.mrb[0].mxu0
  %v357 = vadd.f32 0.0, %v356
  %v358 = vpop.f32.mrb[0].mxu0
  %359 = vdwg.mxu0
  %v360 = vadd.f32 %v287, %v357
  %v361 = vxor.u32 %v360, 2147483648
  %v362 = vmul.f32 %v361, 1.442695
  %v363 = vpow.pop %v362
  %v364 = vadd.f32 %v363, 1.0
  %v365 = vrcp.pop %v364
  %v366 = vmul.f32 1.0, %v365
  %v367 = vtanh.pop %v360
  %v368 = vmul.f32 %v366, %v275
  %370 = vrot.lane.b32.xlu0 %v367, 64
  %v371 = vpop.permute.xlu0 %370
  %v373 = vmul.f32 %v366, %v371
  %375 = vrot.lane.b32.xlu0 %v373, 32
  %v376 = vpop.permute.xlu0 %375
  %v378 = vadd.f32 %v368, %v376
  %v379 = vtanh.pop %v378
  %381 = vrot.lane.b32.xlu0 %v379, 64
  %v382 = vpop.permute.xlu0 %381
  %v384 = vmul.f32 %v366, %v382
  %386 = vrot.lane.b32.xlu0 %v384, 32
  %v387 = vpop.permute.xlu0 %386
  %389 = vst.msk [vmem:[#allocation3 + $0x8] sm:$0xff] %vm183, %v387
  %v390 = vld [vmem:[#allocation2 + $0x10] sm:$0xff]
  %v391 = vsel %vm183, %v387, 0
  %393 = vmatprep.subr.mxu0 0.0
  %394 = vmatpush1.msra.mxu0 %v178
  %395 = vmatprep.subr.mxu0 0.0
  %396 = vmatpush1.msra.mxu0 %v179
  %397 = vmatprep.subr.mxu0 0.0
  %398 = vmatpush1.msra.mxu0 %v180
  %399 = vmatprep.subr.mxu0 0.0
  %400 = vmatpush1.msra.mxu0 %v181
  %401 = vmatprep.subr.mxu0 0.0
  %402 = vmatpush1.msra.mxu0 0.0
  %403 = vmatprep.subr.mxu0 0.0
  %404 = vmatpush1.msra.mxu0 0.0
  %405 = vmatprep.subr.mxu0 0.0
  %406 = vmatpush1.msra.mxu0 0.0
  %407 = vmatprep.subr.mxu0 0.0
  %408 = vmatpush1.msra.mxu0 0.0
  %409 = vmatprep.subr.mxu0 0.0
  %410 = vmatpush1.msra.mxu0 0.0
  %411 = vmatprep.subr.mxu0 0.0
  %412 = vmatpush1.msra.mxu0 0.0
  %413 = vmatprep.subr.mxu0 0.0
  %414 = vmatpush1.msra.mxu0 0.0
  %415 = vmatprep.subr.mxu0 0.0
  %416 = vmatpush1.msra.mxu0 0.0
  %417 = vmatprep.subr.mxu0 0.0
  %418 = vmatpush1.msra.mxu0 0.0
  %419 = vmatprep.subr.mxu0 0.0
  %420 = vmatpush1.msra.mxu0 0.0
  %421 = vmatprep.subr.mxu0 0.0
  %422 = vmatpush1.msra.mxu0 0.0
  %423 = vmatprep.subr.mxu0 0.0
  %424 = vmatpush1.msra.mxu0 0.0
  %425 = vmatprep.subr.mxu0 0.0
  %426 = vmatpush1.msra.mxu0 0.0
  %427 = vmatprep.subr.mxu0 0.0
  %428 = vmatpush1.msra.mxu0 0.0
  %429 = vmatprep.subr.mxu0 0.0
  %430 = vmatpush1.msra.mxu0 0.0
  %431 = vmatprep.subr.mxu0 0.0
  %432 = vmatpush1.msra.mxu0 0.0
  %433 = vmatprep.subr.mxu0 0.0
  %434 = vmatpush1.msra.mxu0 0.0
  %435 = vmatprep.subr.mxu0 0.0
  %436 = vmatpush1.msra.mxu0 0.0
  %437 = vmatprep.subr.mxu0 0.0
  %438 = vmatpush1.msra.mxu0 0.0
  %439 = vmatprep.subr.mxu0 0.0
  %440 = vmatpush1.msra.mxu0 0.0
  %441 = vmatprep.subr.mxu0 0.0
  %442 = vmatpush1.msra.mxu0 0.0
  %443 = vmatprep.subr.mxu0 0.0
  %444 = vmatpush1.msra.mxu0 0.0
  %445 = vmatprep.subr.mxu0 0.0
  %446 = vmatpush1.msra.mxu0 0.0
  %447 = vmatprep.subr.mxu0 0.0
  %448 = vmatpush1.msra.mxu0 0.0
  %449 = vmatprep.subr.mxu0 0.0
  %450 = vmatpush1.msra.mxu0 0.0
  %451 = vmatprep.subr.mxu0 0.0
  %452 = vmatpush1.msra.mxu0 0.0
  %453 = vmatprep.subr.mxu0 0.0
  %454 = vmatpush1.msra.mxu0 0.0
  %455 = vmatprep.subr.mxu0 0.0
  %456 = vmatpush1.msra.mxu0 0.0
  %457 = vmatprep.mubr.f32.mxu0 0.0
  %458 = vmatmul.mubr.f32.gmra.mrb[0].mxu0 %v391
  %v459 = vpop.f32.mrb[0].mxu0
  %v460 = vadd.f32 0.0, %v459
  %v461 = vpop.f32.mrb[0].mxu0
  %462 = vdwg.mxu0
  %v463 = vadd.f32 %v390, %v460
  %v464 = vxor.u32 %v463, 2147483648
  %v465 = vmul.f32 %v464, 1.442695
  %v466 = vpow.pop %v465
  %v467 = vadd.f32 %v466, 1.0
  %v468 = vrcp.pop %v467
  %v469 = vmul.f32 1.0, %v468
  %v470 = vtanh.pop %v463
  %v471 = vmul.f32 %v469, %v378
  %473 = vrot.lane.b32.xlu0 %v470, 64
  %v474 = vpop.permute.xlu0 %473
  %v476 = vmul.f32 %v469, %v474
  %478 = vrot.lane.b32.xlu0 %v476, 32
  %v479 = vpop.permute.xlu0 %478
  %v481 = vadd.f32 %v471, %v479
  %v482 = vtanh.pop %v481
  %484 = vrot.lane.b32.xlu0 %v482, 64
  %v485 = vpop.permute.xlu0 %484
  %v487 = vmul.f32 %v469, %v485
  %489 = vrot.lane.b32.xlu0 %v487, 32
  %v490 = vpop.permute.xlu0 %489
  %492 = vst.msk [vmem:[#allocation3 + $0x10] sm:$0xff] %vm183, %v490
  %v493 = vld [vmem:[#allocation2 + $0x18] sm:$0xff]
  %v494 = vsel %vm183, %v490, 0
  %496 = vmatprep.subr.mxu0 0.0
  %497 = vmatpush1.msra.mxu0 %v178
  %498 = vmatprep.subr.mxu0 0.0
  %499 = vmatpush1.msra.mxu0 %v179
  %500 = vmatprep.subr.mxu0 0.0
  %501 = vmatpush1.msra.mxu0 %v180
  %502 = vmatprep.subr.mxu0 0.0
  %503 = vmatpush1.msra.mxu0 %v181
  %504 = vmatprep.subr.mxu0 0.0
  %505 = vmatpush1.msra.mxu0 0.0
  %506 = vmatprep.subr.mxu0 0.0
  %507 = vmatpush1.msra.mxu0 0.0
  %508 = vmatprep.subr.mxu0 0.0
  %509 = vmatpush1.msra.mxu0 0.0
  %510 = vmatprep.subr.mxu0 0.0
  %511 = vmatpush1.msra.mxu0 0.0
  %512 = vmatprep.subr.mxu0 0.0
  %513 = vmatpush1.msra.mxu0 0.0
  %514 = vmatprep.subr.mxu0 0.0
  %515 = vmatpush1.msra.mxu0 0.0
  %516 = vmatprep.subr.mxu0 0.0
  %517 = vmatpush1.msra.mxu0 0.0
  %518 = vmatprep.subr.mxu0 0.0
  %519 = vmatpush1.msra.mxu0 0.0
  %520 = vmatprep.subr.mxu0 0.0
  %521 = vmatpush1.msra.mxu0 0.0
  %522 = vmatprep.subr.mxu0 0.0
  %523 = vmatpush1.msra.mxu0 0.0
  %524 = vmatprep.subr.mxu0 0.0
  %525 = vmatpush1.msra.mxu0 0.0
  %526 = vmatprep.subr.mxu0 0.0
  %527 = vmatpush1.msra.mxu0 0.0
  %528 = vmatprep.subr.mxu0 0.0
  %529 = vmatpush1.msra.mxu0 0.0
  %530 = vmatprep.subr.mxu0 0.0
  %531 = vmatpush1.msra.mxu0 0.0
  %532 = vmatprep.subr.mxu0 0.0
  %533 = vmatpush1.msra.mxu0 0.0
  %534 = vmatprep.subr.mxu0 0.0
  %535 = vmatpush1.msra.mxu0 0.0
  %536 = vmatprep.subr.mxu0 0.0
  %537 = vmatpush1.msra.mxu0 0.0
  %538 = vmatprep.subr.mxu0 0.0
  %539 = vmatpush1.msra.mxu0 0.0
  %540 = vmatprep.subr.mxu0 0.0
  %541 = vmatpush1.msra.mxu0 0.0
  %542 = vmatprep.subr.mxu0 0.0
  %543 = vmatpush1.msra.mxu0 0.0
  %544 = vmatprep.subr.mxu0 0.0
  %545 = vmatpush1.msra.mxu0 0.0
  %546 = vmatprep.subr.mxu0 0.0
  %547 = vmatpush1.msra.mxu0 0.0
  %548 = vmatprep.subr.mxu0 0.0
  %549 = vmatpush1.msra.mxu0 0.0
  %550 = vmatprep.subr.mxu0 0.0
  %551 = vmatpush1.msra.mxu0 0.0
  %552 = vmatprep.subr.mxu0 0.0
  %553 = vmatpush1.msra.mxu0 0.0
  %554 = vmatprep.subr.mxu0 0.0
  %555 = vmatpush1.msra.mxu0 0.0
  %556 = vmatprep.subr.mxu0 0.0
  %557 = vmatpush1.msra.mxu0 0.0
  %558 = vmatprep.subr.mxu0 0.0
  %559 = vmatpush1.msra.mxu0 0.0
  %560 = vmatprep.mubr.f32.mxu0 0.0
  %561 = vmatmul.mubr.f32.gmra.mrb[0].mxu0 %v494
  %v562 = vpop.f32.mrb[0].mxu0
  %v563 = vadd.f32 0.0, %v562
  %v564 = vpop.f32.mrb[0].mxu0
  %565 = vdwg.mxu0
  %v566 = vadd.f32 %v493, %v563
  %v567 = vxor.u32 %v566, 2147483648
  %v568 = vmul.f32 %v567, 1.442695
  %v569 = vpow.pop %v568
  %v570 = vadd.f32 %v569, 1.0
  %v571 = vrcp.pop %v570
  %v572 = vmul.f32 1.0, %v571
  %v573 = vtanh.pop %v566
  %v574 = vmul.f32 %v572, %v481
  %576 = vrot.lane.b32.xlu0 %v573, 64
  %v577 = vpop.permute.xlu0 %576
  %v579 = vmul.f32 %v572, %v577
  %581 = vrot.lane.b32.xlu0 %v579, 32
  %v582 = vpop.permute.xlu0 %581
  %v584 = vadd.f32 %v574, %v582
  %v585 = vtanh.pop %v584
  %587 = vrot.lane.b32.xlu0 %v585, 64
  %v588 = vpop.permute.xlu0 %587
  %v590 = vmul.f32 %v572, %v588
  %592 = vrot.lane.b32.xlu0 %v590, 32
  %v593 = vpop.permute.xlu0 %592
  %595 = vst.msk [vmem:[#allocation3 + $0x18] sm:$0xff] %vm183, %v593
  %v596 = vld [vmem:[#allocation2 + $0x20] sm:$0xff]
  %v597 = vsel %vm183, %v593, 0
  %599 = vmatprep.subr.mxu0 0.0
  %600 = vmatpush1.msra.mxu0 %v178
  %601 = vmatprep.subr.mxu0 0.0
  %602 = vmatpush1.msra.mxu0 %v179
  %603 = vmatprep.subr.mxu0 0.0
  %604 = vmatpush1.msra.mxu0 %v180
  %605 = vmatprep.subr.mxu0 0.0
  %606 = vmatpush1.msra.mxu0 %v181
  %607 = vmatprep.subr.mxu0 0.0
  %608 = vmatpush1.msra.mxu0 0.0
  %609 = vmatprep.subr.mxu0 0.0
  %610 = vmatpush1.msra.mxu0 0.0
  %611 = vmatprep.subr.mxu0 0.0
  %612 = vmatpush1.msra.mxu0 0.0
  %613 = vmatprep.subr.mxu0 0.0
  %614 = vmatpush1.msra.mxu0 0.0
  %615 = vmatprep.subr.mxu0 0.0
  %616 = vmatpush1.msra.mxu0 0.0
  %617 = vmatprep.subr.mxu0 0.0
  %618 = vmatpush1.msra.mxu0 0.0
  %619 = vmatprep.subr.mxu0 0.0
  %620 = vmatpush1.msra.mxu0 0.0
  %621 = vmatprep.subr.mxu0 0.0
  %622 = vmatpush1.msra.mxu0 0.0
  %623 = vmatprep.subr.mxu0 0.0
  %624 = vmatpush1.msra.mxu0 0.0
  %625 = vmatprep.subr.mxu0 0.0
  %626 = vmatpush1.msra.mxu0 0.0
  %627 = vmatprep.subr.mxu0 0.0
  %628 = vmatpush1.msra.mxu0 0.0
  %629 = vmatprep.subr.mxu0 0.0
  %630 = vmatpush1.msra.mxu0 0.0
  %631 = vmatprep.subr.mxu0 0.0
  %632 = vmatpush1.msra.mxu0 0.0
  %633 = vmatprep.subr.mxu0 0.0
  %634 = vmatpush1.msra.mxu0 0.0
  %635 = vmatprep.subr.mxu0 0.0
  %636 = vmatpush1.msra.mxu0 0.0
  %637 = vmatprep.subr.mxu0 0.0
  %638 = vmatpush1.msra.mxu0 0.0
  %639 = vmatprep.subr.mxu0 0.0
  %640 = vmatpush1.msra.mxu0 0.0
  %641 = vmatprep.subr.mxu0 0.0
  %642 = vmatpush1.msra.mxu0 0.0
  %643 = vmatprep.subr.mxu0 0.0
  %644 = vmatpush1.msra.mxu0 0.0
  %645 = vmatprep.subr.mxu0 0.0
  %646 = vmatpush1.msra.mxu0 0.0
  %647 = vmatprep.subr.mxu0 0.0
  %648 = vmatpush1.msra.mxu0 0.0
  %649 = vmatprep.subr.mxu0 0.0
  %650 = vmatpush1.msra.mxu0 0.0
  %651 = vmatprep.subr.mxu0 0.0
  %652 = vmatpush1.msra.mxu0 0.0
  %653 = vmatprep.subr.mxu0 0.0
  %654 = vmatpush1.msra.mxu0 0.0
  %655 = vmatprep.subr.mxu0 0.0
  %656 = vmatpush1.msra.mxu0 0.0
  %657 = vmatprep.subr.mxu0 0.0
  %658 = vmatpush1.msra.mxu0 0.0
  %659 = vmatprep.subr.mxu0 0.0
  %660 = vmatpush1.msra.mxu0 0.0
  %661 = vmatprep.subr.mxu0 0.0
  %662 = vmatpush1.msra.mxu0 0.0
  %663 = vmatprep.mubr.f32.mxu0 0.0
  %664 = vmatmul.mubr.f32.gmra.mrb[0].mxu0 %v597
  %v665 = vpop.f32.mrb[0].mxu0
  %v666 = vadd.f32 0.0, %v665
  %v667 = vpop.f32.mrb[0].mxu0
  %668 = vdwg.mxu0
  %v669 = vadd.f32 %v596, %v666
  %v670 = vxor.u32 %v669, 2147483648
  %v671 = vmul.f32 %v670, 1.442695
  %v672 = vpow.pop %v671
  %v673 = vadd.f32 %v672, 1.0
  %v674 = vrcp.pop %v673
  %v675 = vmul.f32 1.0, %v674
  %v676 = vtanh.pop %v669
  %v677 = vmul.f32 %v675, %v584
  %679 = vrot.lane.b32.xlu0 %v676, 64
  %v680 = vpop.permute.xlu0 %679
  %v682 = vmul.f32 %v675, %v680
  %684 = vrot.lane.b32.xlu0 %v682, 32
  %v685 = vpop.permute.xlu0 %684
  %v687 = vadd.f32 %v677, %v685
  %v688 = vtanh.pop %v687
  %690 = vrot.lane.b32.xlu0 %v688, 64
  %v691 = vpop.permute.xlu0 %690
  %v693 = vmul.f32 %v675, %v691
  %695 = vrot.lane.b32.xlu0 %v693, 32
  %v696 = vpop.permute.xlu0 %695
  %698 = vst.msk [vmem:[#allocation3 + $0x20] sm:$0xff] %vm183, %v696
  %v699 = vld [vmem:[#allocation2 + $0x28] sm:$0xff]
  %v700 = vsel %vm183, %v696, 0
  %702 = vmatprep.subr.mxu0 0.0
  %703 = vmatpush1.msra.mxu0 %v178
  %704 = vmatprep.subr.mxu0 0.0
  %705 = vmatpush1.msra.mxu0 %v179
  %706 = vmatprep.subr.mxu0 0.0
  %707 = vmatpush1.msra.mxu0 %v180
  %708 = vmatprep.subr.mxu0 0.0
  %709 = vmatpush1.msra.mxu0 %v181
  %710 = vmatprep.subr.mxu0 0.0
  %711 = vmatpush1.msra.mxu0 0.0
  %712 = vmatprep.subr.mxu0 0.0
  %713 = vmatpush1.msra.mxu0 0.0
  %714 = vmatprep.subr.mxu0 0.0
  %715 = vmatpush1.msra.mxu0 0.0
  %716 = vmatprep.subr.mxu0 0.0
  %717 = vmatpush1.msra.mxu0 0.0
  %718 = vmatprep.subr.mxu0 0.0
  %719 = vmatpush1.msra.mxu0 0.0
  %720 = vmatprep.subr.mxu0 0.0
  %721 = vmatpush1.msra.mxu0 0.0
  %722 = vmatprep.subr.mxu0 0.0
  %723 = vmatpush1.msra.mxu0 0.0
  %724 = vmatprep.subr.mxu0 0.0
  %725 = vmatpush1.msra.mxu0 0.0
  %726 = vmatprep.subr.mxu0 0.0
  %727 = vmatpush1.msra.mxu0 0.0
  %728 = vmatprep.subr.mxu0 0.0
  %729 = vmatpush1.msra.mxu0 0.0
  %730 = vmatprep.subr.mxu0 0.0
  %731 = vmatpush1.msra.mxu0 0.0
  %732 = vmatprep.subr.mxu0 0.0
  %733 = vmatpush1.msra.mxu0 0.0
  %734 = vmatprep.subr.mxu0 0.0
  %735 = vmatpush1.msra.mxu0 0.0
  %736 = vmatprep.subr.mxu0 0.0
  %737 = vmatpush1.msra.mxu0 0.0
  %738 = vmatprep.subr.mxu0 0.0
  %739 = vmatpush1.msra.mxu0 0.0
  %740 = vmatprep.subr.mxu0 0.0
  %741 = vmatpush1.msra.mxu0 0.0
  %742 = vmatprep.subr.mxu0 0.0
  %743 = vmatpush1.msra.mxu0 0.0
  %744 = vmatprep.subr.mxu0 0.0
  %745 = vmatpush1.msra.mxu0 0.0
  %746 = vmatprep.subr.mxu0 0.0
  %747 = vmatpush1.msra.mxu0 0.0
  %748 = vmatprep.subr.mxu0 0.0
  %749 = vmatpush1.msra.mxu0 0.0
  %750 = vmatprep.subr.mxu0 0.0
  %751 = vmatpush1.msra.mxu0 0.0
  %752 = vmatprep.subr.mxu0 0.0
  %753 = vmatpush1.msra.mxu0 0.0
  %754 = vmatprep.subr.mxu0 0.0
  %755 = vmatpush1.msra.mxu0 0.0
  %756 = vmatprep.subr.mxu0 0.0
  %757 = vmatpush1.msra.mxu0 0.0
  %758 = vmatprep.subr.mxu0 0.0
  %759 = vmatpush1.msra.mxu0 0.0
  %760 = vmatprep.subr.mxu0 0.0
  %761 = vmatpush1.msra.mxu0 0.0
  %762 = vmatprep.subr.mxu0 0.0
  %763 = vmatpush1.msra.mxu0 0.0
  %764 = vmatprep.subr.mxu0 0.0
  %765 = vmatpush1.msra.mxu0 0.0
  %766 = vmatprep.mubr.f32.mxu0 0.0
  %767 = vmatmul.mubr.f32.gmra.mrb[0].mxu0 %v700
  %v768 = vpop.f32.mrb[0].mxu0
  %v769 = vadd.f32 0.0, %v768
  %v770 = vpop.f32.mrb[0].mxu0
  %771 = vdwg.mxu0
  %v772 = vadd.f32 %v699, %v769
  %v773 = vxor.u32 %v772, 2147483648
  %v774 = vmul.f32 %v773, 1.442695
  %v775 = vpow.pop %v774
  %v776 = vadd.f32 %v775, 1.0
  %v777 = vrcp.pop %v776
  %v778 = vmul.f32 1.0, %v777
  %v779 = vtanh.pop %v772
  %v780 = vmul.f32 %v778, %v687
  %782 = vrot.lane.b32.xlu0 %v779, 64
  %v783 = vpop.permute.xlu0 %782
  %v785 = vmul.f32 %v778, %v783
  %787 = vrot.lane.b32.xlu0 %v785, 32
  %v788 = vpop.permute.xlu0 %787
  %v790 = vadd.f32 %v780, %v788
  %v791 = vtanh.pop %v790
  %793 = vrot.lane.b32.xlu0 %v791, 64
  %v794 = vpop.permute.xlu0 %793
  %v796 = vmul.f32 %v778, %v794
  %798 = vrot.lane.b32.xlu0 %v796, 32
  %v799 = vpop.permute.xlu0 %798
  %801 = vst.msk [vmem:[#allocation3 + $0x28] sm:$0xff] %vm183, %v799
  %v802 = vld [vmem:[#allocation2 + $0x30] sm:$0xff]
  %v803 = vsel %vm183, %v799, 0
  %805 = vmatprep.subr.mxu0 0.0
  %806 = vmatpush1.msra.mxu0 %v178
  %807 = vmatprep.subr.mxu0 0.0
  %808 = vmatpush1.msra.mxu0 %v179
  %809 = vmatprep.subr.mxu0 0.0
  %810 = vmatpush1.msra.mxu0 %v180
  %811 = vmatprep.subr.mxu0 0.0
  %812 = vmatpush1.msra.mxu0 %v181
  %813 = vmatprep.subr.mxu0 0.0
  %814 = vmatpush1.msra.mxu0 0.0
  %815 = vmatprep.subr.mxu0 0.0
  %816 = vmatpush1.msra.mxu0 0.0
  %817 = vmatprep.subr.mxu0 0.0
  %818 = vmatpush1.msra.mxu0 0.0
  %819 = vmatprep.subr.mxu0 0.0
  %820 = vmatpush1.msra.mxu0 0.0
  %821 = vmatprep.subr.mxu0 0.0
  %822 = vmatpush1.msra.mxu0 0.0
  %823 = vmatprep.subr.mxu0 0.0
  %824 = vmatpush1.msra.mxu0 0.0
  %825 = vmatprep.subr.mxu0 0.0
  %826 = vmatpush1.msra.mxu0 0.0
  %827 = vmatprep.subr.mxu0 0.0
  %828 = vmatpush1.msra.mxu0 0.0
  %829 = vmatprep.subr.mxu0 0.0
  %830 = vmatpush1.msra.mxu0 0.0
  %831 = vmatprep.subr.mxu0 0.0
  %832 = vmatpush1.msra.mxu0 0.0
  %833 = vmatprep.subr.mxu0 0.0
  %834 = vmatpush1.msra.mxu0 0.0
  %835 = vmatprep.subr.mxu0 0.0
  %836 = vmatpush1.msra.mxu0 0.0
  %837 = vmatprep.subr.mxu0 0.0
  %838 = vmatpush1.msra.mxu0 0.0
  %839 = vmatprep.subr.mxu0 0.0
  %840 = vmatpush1.msra.mxu0 0.0
  %841 = vmatprep.subr.mxu0 0.0
  %842 = vmatpush1.msra.mxu0 0.0
  %843 = vmatprep.subr.mxu0 0.0
  %844 = vmatpush1.msra.mxu0 0.0
  %845 = vmatprep.subr.mxu0 0.0
  %846 = vmatpush1.msra.mxu0 0.0
  %847 = vmatprep.subr.mxu0 0.0
  %848 = vmatpush1.msra.mxu0 0.0
  %849 = vmatprep.subr.mxu0 0.0
  %850 = vmatpush1.msra.mxu0 0.0
  %851 = vmatprep.subr.mxu0 0.0
  %852 = vmatpush1.msra.mxu0 0.0
  %853 = vmatprep.subr.mxu0 0.0
  %854 = vmatpush1.msra.mxu0 0.0
  %855 = vmatprep.subr.mxu0 0.0
  %856 = vmatpush1.msra.mxu0 0.0
  %857 = vmatprep.subr.mxu0 0.0
  %858 = vmatpush1.msra.mxu0 0.0
  %859 = vmatprep.subr.mxu0 0.0
  %860 = vmatpush1.msra.mxu0 0.0
  %861 = vmatprep.subr.mxu0 0.0
  %862 = vmatpush1.msra.mxu0 0.0
  %863 = vmatprep.subr.mxu0 0.0
  %864 = vmatpush1.msra.mxu0 0.0
  %865 = vmatprep.subr.mxu0 0.0
  %866 = vmatpush1.msra.mxu0 0.0
  %867 = vmatprep.subr.mxu0 0.0
  %868 = vmatpush1.msra.mxu0 0.0
  %869 = vmatprep.mubr.f32.mxu0 0.0
  %870 = vmatmul.mubr.f32.gmra.mrb[0].mxu0 %v803
  %v871 = vpop.f32.mrb[0].mxu0
  %v872 = vadd.f32 0.0, %v871
  %v873 = vpop.f32.mrb[0].mxu0
  %874 = vdwg.mxu0
  %v875 = vadd.f32 %v802, %v872
  %v876 = vxor.u32 %v875, 2147483648
  %v877 = vmul.f32 %v876, 1.442695
  %v878 = vpow.pop %v877
  %v879 = vadd.f32 %v878, 1.0
  %v880 = vrcp.pop %v879
  %v881 = vmul.f32 1.0, %v880
  %v882 = vtanh.pop %v875
  %v883 = vmul.f32 %v881, %v790
  %885 = vrot.lane.b32.xlu0 %v882, 64
  %v886 = vpop.permute.xlu0 %885
  %v888 = vmul.f32 %v881, %v886
  %890 = vrot.lane.b32.xlu0 %v888, 32
  %v891 = vpop.permute.xlu0 %890
  %v893 = vadd.f32 %v883, %v891
  %v894 = vtanh.pop %v893
  %896 = vrot.lane.b32.xlu0 %v894, 64
  %v897 = vpop.permute.xlu0 %896
  %v899 = vmul.f32 %v881, %v897
  %901 = vrot.lane.b32.xlu0 %v899, 32
  %v902 = vpop.permute.xlu0 %901
  %904 = vst.msk [vmem:[#allocation3 + $0x30] sm:$0xff] %vm183, %v902
  %v905 = vld [vmem:[#allocation2 + $0x38] sm:$0xff]
  %v906 = vsel %vm183, %v902, 0
  %908 = vmatprep.subr.mxu0 0.0
  %909 = vmatpush1.msra.mxu0 %v178
  %910 = vmatprep.subr.mxu0 0.0
  %911 = vmatpush1.msra.mxu0 %v179
  %912 = vmatprep.subr.mxu0 0.0
  %913 = vmatpush1.msra.mxu0 %v180
  %914 = vmatprep.subr.mxu0 0.0
  %915 = vmatpush1.msra.mxu0 %v181
  %916 = vmatprep.subr.mxu0 0.0
  %917 = vmatpush1.msra.mxu0 0.0
  %918 = vmatprep.subr.mxu0 0.0
  %919 = vmatpush1.msra.mxu0 0.0
  %920 = vmatprep.subr.mxu0 0.0
  %921 = vmatpush1.msra.mxu0 0.0
  %922 = vmatprep.subr.mxu0 0.0
  %923 = vmatpush1.msra.mxu0 0.0
  %924 = vmatprep.subr.mxu0 0.0
  %925 = vmatpush1.msra.mxu0 0.0
  %926 = vmatprep.subr.mxu0 0.0
  %927 = vmatpush1.msra.mxu0 0.0
  %928 = vmatprep.subr.mxu0 0.0
  %929 = vmatpush1.msra.mxu0 0.0
  %930 = vmatprep.subr.mxu0 0.0
  %931 = vmatpush1.msra.mxu0 0.0
  %932 = vmatprep.subr.mxu0 0.0
  %933 = vmatpush1.msra.mxu0 0.0
  %934 = vmatprep.subr.mxu0 0.0
  %935 = vmatpush1.msra.mxu0 0.0
  %936 = vmatprep.subr.mxu0 0.0
  %937 = vmatpush1.msra.mxu0 0.0
  %938 = vmatprep.subr.mxu0 0.0
  %939 = vmatpush1.msra.mxu0 0.0
  %940 = vmatprep.subr.mxu0 0.0
  %941 = vmatpush1.msra.mxu0 0.0
  %942 = vmatprep.subr.mxu0 0.0
  %943 = vmatpush1.msra.mxu0 0.0
  %944 = vmatprep.subr.mxu0 0.0
  %945 = vmatpush1.msra.mxu0 0.0
  %946 = vmatprep.subr.mxu0 0.0
  %947 = vmatpush1.msra.mxu0 0.0
  %948 = vmatprep.subr.mxu0 0.0
  %949 = vmatpush1.msra.mxu0 0.0
  %950 = vmatprep.subr.mxu0 0.0
  %951 = vmatpush1.msra.mxu0 0.0
  %952 = vmatprep.subr.mxu0 0.0
  %953 = vmatpush1.msra.mxu0 0.0
  %954 = vmatprep.subr.mxu0 0.0
  %955 = vmatpush1.msra.mxu0 0.0
  %956 = vmatprep.subr.mxu0 0.0
  %957 = vmatpush1.msra.mxu0 0.0
  %958 = vmatprep.subr.mxu0 0.0
  %959 = vmatpush1.msra.mxu0 0.0
  %960 = vmatprep.subr.mxu0 0.0
  %961 = vmatpush1.msra.mxu0 0.0
  %962 = vmatprep.subr.mxu0 0.0
  %963 = vmatpush1.msra.mxu0 0.0
  %964 = vmatprep.subr.mxu0 0.0
  %965 = vmatpush1.msra.mxu0 0.0
  %966 = vmatprep.subr.mxu0 0.0
  %967 = vmatpush1.msra.mxu0 0.0
  %968 = vmatprep.subr.mxu0 0.0
  %969 = vmatpush1.msra.mxu0 0.0
  %970 = vmatprep.subr.mxu0 0.0
  %971 = vmatpush1.msra.mxu0 0.0
  %972 = vmatprep.mubr.f32.mxu0 0.0
  %973 = vmatmul.mubr.f32.gmra.mrb[0].mxu0 %v906
  %v974 = vpop.f32.mrb[0].mxu0
  %v975 = vadd.f32 0.0, %v974
  %v976 = vpop.f32.mrb[0].mxu0
  %977 = vdwg.mxu0
  %v978 = vadd.f32 %v905, %v975
  %v979 = vxor.u32 %v978, 2147483648
  %v980 = vmul.f32 %v979, 1.442695
  %v981 = vpow.pop %v980
  %v982 = vadd.f32 %v981, 1.0
  %v983 = vrcp.pop %v982
  %v984 = vmul.f32 1.0, %v983
  %v985 = vtanh.pop %v978
  %v986 = vmul.f32 %v984, %v893
  %988 = vrot.lane.b32.xlu0 %v985, 64
  %v989 = vpop.permute.xlu0 %988
  %v991 = vmul.f32 %v984, %v989
  %993 = vrot.lane.b32.xlu0 %v991, 32
  %v994 = vpop.permute.xlu0 %993
  %v996 = vadd.f32 %v986, %v994
  %v997 = vtanh.pop %v996
  %999 = vrot.lane.b32.xlu0 %v997, 64
  %v1000 = vpop.permute.xlu0 %999
  %v1002 = vmul.f32 %v984, %v1000
  %1004 = vrot.lane.b32.xlu0 %v1002, 32
  %v1005 = vpop.permute.xlu0 %1004
  %1007 = vst.msk [vmem:[#allocation3 + $0x38] sm:$0xff] %vm183, %v1005
  %v1008 = vld [vmem:[#allocation3] sm:$0xff]
  %v1009 = vld [vmem:[#allocation3 + $0x8] sm:$0xff]
  %v1010 = vld [vmem:[#allocation3 + $0x10] sm:$0xff]
  %v1011 = vld [vmem:[#allocation3 + $0x18] sm:$0xff]
  %v1012 = vld [vmem:[#allocation3 + $0x20] sm:$0xff]
  %v1013 = vld [vmem:[#allocation3 + $0x28] sm:$0xff]
  %v1014 = vld [vmem:[#allocation3 + $0x30] sm:$0xff]
  %v1015 = vld [vmem:[#allocation3 + $0x38] sm:$0xff]
  %v1016 = vld [vmem:[%s4] sm:$0xff]
  %v1017 = vld [vmem:[%s4 + $0x8] sm:$0xff]
  %v1018 = vld [vmem:[%s4 + $0x10] sm:$0xff]
  %v1019 = vld [vmem:[%s4 + $0x18] sm:$0xff]
  %v1020 = vld [vmem:[%s5] sm:$0x1]
  %v1022 = vlaneseq
  %v1023 = vshrl.u32 %v1022, 7
  %v1024 = vsub.s32 0, %v1023
  %v1025 = vrot.slane %v1020, %v1024
  %v1028 = vsel %vm183, %v1008, 0
  %v1031 = vsel %vm183, %v1009, 0
  %v1034 = vsel %vm183, %v1010, 0
  %v1037 = vsel %vm183, %v1011, 0
  %v1040 = vsel %vm183, %v1012, 0
  %v1043 = vsel %vm183, %v1013, 0
  %v1046 = vsel %vm183, %v1014, 0
  %v1049 = vsel %vm183, %v1015, 0
  %1051 = vmatprep.subr.mxu0 0.0
  %1052 = vmatpush1.msra.mxu0 %v1016
  %1053 = vmatprep.subr.mxu0 0.0
  %1054 = vmatpush1.msra.mxu0 %v1017
  %1055 = vmatprep.subr.mxu0 0.0
  %1056 = vmatpush1.msra.mxu0 %v1018
  %1057 = vmatprep.subr.mxu0 0.0
  %1058 = vmatpush1.msra.mxu0 %v1019
  %1059 = vmatprep.subr.mxu0 0.0
  %1060 = vmatpush1.msra.mxu0 0.0
  %1061 = vmatprep.subr.mxu0 0.0
  %1062 = vmatpush1.msra.mxu0 0.0
  %1063 = vmatprep.subr.mxu0 0.0
  %1064 = vmatpush1.msra.mxu0 0.0
  %1065 = vmatprep.subr.mxu0 0.0
  %1066 = vmatpush1.msra.mxu0 0.0
  %1067 = vmatprep.subr.mxu0 0.0
  %1068 = vmatpush1.msra.mxu0 0.0
  %1069 = vmatprep.subr.mxu0 0.0
  %1070 = vmatpush1.msra.mxu0 0.0
  %1071 = vmatprep.subr.mxu0 0.0
  %1072 = vmatpush1.msra.mxu0 0.0
  %1073 = vmatprep.subr.mxu0 0.0
  %1074 = vmatpush1.msra.mxu0 0.0
  %1075 = vmatprep.subr.mxu0 0.0
  %1076 = vmatpush1.msra.mxu0 0.0
  %1077 = vmatprep.subr.mxu0 0.0
  %1078 = vmatpush1.msra.mxu0 0.0
  %1079 = vmatprep.subr.mxu0 0.0
  %1080 = vmatpush1.msra.mxu0 0.0
  %1081 = vmatprep.subr.mxu0 0.0
  %1082 = vmatpush1.msra.mxu0 0.0
  %1083 = vmatprep.subr.mxu0 0.0
  %1084 = vmatpush1.msra.mxu0 0.0
  %1085 = vmatprep.subr.mxu0 0.0
  %1086 = vmatpush1.msra.mxu0 0.0
  %1087 = vmatprep.subr.mxu0 0.0
  %1088 = vmatpush1.msra.mxu0 0.0
  %1089 = vmatprep.subr.mxu0 0.0
  %1090 = vmatpush1.msra.mxu0 0.0
  %1091 = vmatprep.subr.mxu0 0.0
  %1092 = vmatpush1.msra.mxu0 0.0
  %1093 = vmatprep.subr.mxu0 0.0
  %1094 = vmatpush1.msra.mxu0 0.0
  %1095 = vmatprep.subr.mxu0 0.0
  %1096 = vmatpush1.msra.mxu0 0.0
  %1097 = vmatprep.subr.mxu0 0.0
  %1098 = vmatpush1.msra.mxu0 0.0
  %1099 = vmatprep.subr.mxu0 0.0
  %1100 = vmatpush1.msra.mxu0 0.0
  %1101 = vmatprep.subr.mxu0 0.0
  %1102 = vmatpush1.msra.mxu0 0.0
  %1103 = vmatprep.subr.mxu0 0.0
  %1104 = vmatpush1.msra.mxu0 0.0
  %1105 = vmatprep.subr.mxu0 0.0
  %1106 = vmatpush1.msra.mxu0 0.0
  %1107 = vmatprep.subr.mxu0 0.0
  %1108 = vmatpush1.msra.mxu0 0.0
  %1109 = vmatprep.subr.mxu0 0.0
  %1110 = vmatpush1.msra.mxu0 0.0
  %1111 = vmatprep.subr.mxu0 0.0
  %1112 = vmatpush1.msra.mxu0 0.0
  %1113 = vmatprep.subr.mxu0 0.0
  %1114 = vmatpush1.msra.mxu0 0.0
  %1115 = vmatprep.mubr.f32.mxu0 0.0
  %1116 = vmatmul.mubr.f32.gmra.mrb[0].mxu0 %v1028
  %v1117 = vpop.f32.mrb[0].mxu0
  %v1118 = vadd.f32 %v1025, %v1117
  %v1119 = vpop.f32.mrb[0].mxu0
  %1120 = vmatprep.mubr.f32.mxu0 0.0
  %1121 = vmatmul.mubr.f32.gmra.mrb[0].mxu0 %v1031
  %v1122 = vpop.f32.mrb[0].mxu0
  %v1123 = vadd.f32 %v1025, %v1122
  %v1124 = vpop.f32.mrb[0].mxu0
  %1125 = vmatprep.mubr.f32.mxu0 0.0
  %1126 = vmatmul.mubr.f32.gmra.mrb[0].mxu0 %v1034
  %v1127 = vpop.f32.mrb[0].mxu0
  %v1128 = vadd.f32 %v1025, %v1127
  %v1129 = vpop.f32.mrb[0].mxu0
  %1130 = vmatprep.mubr.f32.mxu0 0.0
  %1131 = vmatmul.mubr.f32.gmra.mrb[0].mxu0 %v1037
  %v1132 = vpop.f32.mrb[0].mxu0
  %v1133 = vadd.f32 %v1025, %v1132
  %v1134 = vpop.f32.mrb[0].mxu0
  %1135 = vmatprep.mubr.f32.mxu0 0.0
  %1136 = vmatmul.mubr.f32.gmra.mrb[0].mxu0 %v1040
  %v1137 = vpop.f32.mrb[0].mxu0
  %v1138 = vadd.f32 %v1025, %v1137
  %v1139 = vpop.f32.mrb[0].mxu0
  %1140 = vmatprep.mubr.f32.mxu0 0.0
  %1141 = vmatmul.mubr.f32.gmra.mrb[0].mxu0 %v1043
  %v1142 = vpop.f32.mrb[0].mxu0
  %v1143 = vadd.f32 %v1025, %v1142
  %v1144 = vpop.f32.mrb[0].mxu0
  %1145 = vmatprep.mubr.f32.mxu0 0.0
  %1146 = vmatmul.mubr.f32.gmra.mrb[0].mxu0 %v1046
  %v1147 = vpop.f32.mrb[0].mxu0
  %v1148 = vadd.f32 %v1025, %v1147
  %v1149 = vpop.f32.mrb[0].mxu0
  %1150 = vmatprep.mubr.f32.mxu0 0.0
  %1151 = vmatmul.mubr.f32.gmra.mrb[0].mxu0 %v1049
  %v1152 = vpop.f32.mrb[0].mxu0
  %v1153 = vadd.f32 %v1025, %v1152
  %v1154 = vpop.f32.mrb[0].mxu0
  %1155 = vdwg.mxu0
  %1156 = vst.msk [vmem:[%s6] sm:$0xff] %vm40, %v1118
  %1157 = vst.msk [vmem:[%s6 + $0x8] sm:$0xff] %vm40, %v1123
  %1158 = vst.msk [vmem:[%s6 + $0x10] sm:$0xff] %vm40, %v1128
  %1159 = vst.msk [vmem:[%s6 + $0x18] sm:$0xff] %vm40, %v1133
  %1160 = vst.msk [vmem:[%s6 + $0x20] sm:$0xff] %vm40, %v1138
  %1161 = vst.msk [vmem:[%s6 + $0x28] sm:$0xff] %vm40, %v1143
  %1162 = vst.msk [vmem:[%s6 + $0x30] sm:$0xff] %vm40, %v1148
  %1163 = vst.msk [vmem:[%s6 + $0x38] sm:$0xff] %vm40, %v1153
  // Predicated region
  $region26: #{tpu_custom_call.1} parent=0 // pred_check
    _
  $region27: #{tpu_custom_call.1} parent=0 // pred_check_branch
    %1165 = sbr.rel (0) target = $region29
  $region28: #{tpu_custom_call.1} parent=0 // pred_region
    _
  $region29: #{tpu_custom_call.1} parent=0 // pred_fallthru
    _
  // Predicated region
  $region30: #{tpu_custom_call.1} parent=0 // pred_check
    _
  $region31: #{tpu_custom_call.1} parent=0 // pred_check_branch
    %1167 = sbr.rel (0) target = $region33
  $region32: #{tpu_custom_call.1} parent=0 // pred_region
    _
  $region33: #{tpu_custom_call.1} parent=0 // pred_fallthru
    _

</llo_original>
